<compile_context>
chip_gen: v7x
topology: tpu7x:2x2x1
jax: 0.10.0
libtpu: 0.0.40
codegen_flags: <defaults>
</compile_context>

<pallas_src>
import functools

import jax
import jax.numpy as jnp
import numpy as np
from jax.experimental import pallas as pl
from jax.experimental.pallas import tpu as pltpu

_LRELU_SLOPE = 0.2
_BN_EPS = 1e-5


def _lrelu(h):
    # slope 0.2 < 1  =>  LeakyReLU(h) == max(h, 0.2*h)  (single VPU max)
    return jnp.maximum(h, _LRELU_SLOPE * h)


def _accumulate_lane_dense(h2, s, q, tile_p):
    """Add (ndf2, tile_p) f32 h2 into (ndf2, 128) sum / sum-of-squares partials
    using lane-aligned static slices (VPU only, no cross-lane XLU reduce)."""
    for i in range(tile_p // 128):
        blk = h2[:, i * 128:(i + 1) * 128]
        s = s + blk
        q = q + blk * blk
    return s, q


# ---------------------------------------------------------------------------
# Fused kernel: grid = (pass, N, num_tiles), h2 kept resident in VMEM scratch
# ---------------------------------------------------------------------------
def _fused_kernel(x_ref, w1_ref, b1_ref, w2_ref, gamma_ref, beta_ref, w3_ref,
                  o_ref, h2_buf, sum_acc, ssq_acc,
                  *, num_tiles, tile_p, hw, n_pixels, masked, eps):
    p = pl.program_id(0)       # 0: conv1+lrelu+conv2+stats, 1: BN+lrelu+conv3
    n = pl.program_id(1)
    t = pl.program_id(2)
    blk = n * num_tiles + t

    @pl.when(p == 0)
    def _phase_stats():
        @pl.when(jnp.logical_and(n == 0, t == 0))
        def _init():
            sum_acc[...] = jnp.zeros_like(sum_acc)
            ssq_acc[...] = jnp.zeros_like(ssq_acc)

        x = x_ref[0]                                                 # (Cin, P)
        h1 = jnp.dot(w1_ref[...], x,
                     preferred_element_type=jnp.float32) + b1_ref[...]
        h1 = _lrelu(h1)                                              # (ndf, P) f32
        h2 = jnp.dot(w2_ref[...], h1.astype(w2_ref.dtype),
                     preferred_element_type=jnp.float32)             # (ndf2, P) f32

        # Stash h2 for pass 1 (no recompute of conv1/conv2 later).
        h2_buf[blk] = h2.astype(h2_buf.dtype)

        if masked:
            col = jax.lax.broadcasted_iota(jnp.int32, (1, tile_p), 1)
            valid = (t * tile_p + col) < hw
            h2_stats = jnp.where(valid, h2, 0.0)
        else:
            h2_stats = h2

        s, q = _accumulate_lane_dense(h2_stats, sum_acc[...], ssq_acc[...], tile_p)
        sum_acc[...] = s
        ssq_acc[...] = q

    @pl.when(p == 1)
    def _phase_apply():
        inv_cnt = 1.0 / float(n_pixels)
        mean = jnp.sum(sum_acc[...], axis=1, keepdims=True) * inv_cnt   # (ndf2, 1)
        msq = jnp.sum(ssq_acc[...], axis=1, keepdims=True) * inv_cnt
        var = jnp.maximum(msq - mean * mean, 0.0)
        scale = gamma_ref[...] * jax.lax.rsqrt(var + eps)
        shift = beta_ref[...] - mean * scale

        h2 = h2_buf[blk].astype(jnp.float32)                            # (ndf2, P)
        h3 = _lrelu(h2 * scale + shift)
        out = jnp.dot(w3_ref[...], h3.astype(w3_ref.dtype),
                      preferred_element_type=jnp.float32)               # (1, P)
        o_ref[0] = out.astype(o_ref.dtype)


# ---------------------------------------------------------------------------
# Two-pass fallback (recompute) kernels — used when h2 doesn't fit in VMEM
# ---------------------------------------------------------------------------
def _stats_kernel(x_ref, w1_ref, b1_ref, w2_ref, sum_ref, ssq_ref,
                  *, tile_p, hw, masked):
    @pl.when(jnp.logical_and(pl.program_id(0) == 0, pl.program_id(1) == 0))
    def _init():
        sum_ref[...] = jnp.zeros_like(sum_ref)
        ssq_ref[...] = jnp.zeros_like(ssq_ref)

    x = x_ref[0]
    h1 = _lrelu(jnp.dot(w1_ref[...], x,
                        preferred_element_type=jnp.float32) + b1_ref[...])
    h2 = jnp.dot(w2_ref[...], h1.astype(w2_ref.dtype),
                 preferred_element_type=jnp.float32)

    if masked:
        col = jax.lax.broadcasted_iota(jnp.int32, (1, tile_p), 1)
        valid = (pl.program_id(1) * tile_p + col) < hw
        h2 = jnp.where(valid, h2, 0.0)

    s, q = _accumulate_lane_dense(h2, sum_ref[...], ssq_ref[...], tile_p)
    sum_ref[...] = s
    ssq_ref[...] = q


def _apply_kernel(x_ref, w1_ref, b1_ref, w2s_ref, shift_ref, w3_ref, o_ref):
    # w2s already carries the BN scale (folded in the wrapper); only '+ shift' here.
    x = x_ref[0]
    h1 = _lrelu(jnp.dot(w1_ref[...], x,
                        preferred_element_type=jnp.float32) + b1_ref[...])
    h2n = jnp.dot(w2s_ref[...], h1.astype(w2s_ref.dtype),
                  preferred_element_type=jnp.float32) + shift_ref[...]
    h3 = _lrelu(h2n)
    out = jnp.dot(w3_ref[...], h3.astype(w3_ref.dtype),
                  preferred_element_type=jnp.float32)
    o_ref[0] = out.astype(o_ref.dtype)


# ---------------------------------------------------------------------------
# Wrapper
# ---------------------------------------------------------------------------
def pixel_discriminator_forward(x_nchw, params, *, compute_dtype=jnp.bfloat16,
                                eps=_BN_EPS, max_pixel_tile=8192,
                                max_fused_h2_bytes=24 * 2**20):
    """x_nchw: (N, Cin, H, W) float32.  Returns (N, 1, H, W) float32 logits.

    compute_dtype: matmul input dtype (bf16 default = native MXU path); BN stats,
    normalization and LeakyReLU are always f32.
    """
    N, Cin, H, W = x_nchw.shape
    HW = H * W
    ndf = params["w1"].shape[0]
    ndf2 = params["w2"].shape[0]

    # Pixel tiling: pad H*W up to a multiple of the tile so tiles are 128-aligned.
    hw128 = ((HW + 127) // 128) * 128
    tile_p = min(max_pixel_tile, hw128)
    hw_pad = ((HW + tile_p - 1) // tile_p) * tile_p
    num_tiles = hw_pad // tile_p
    masked = hw_pad != HW
    n_pixels = N * HW              # true BN pixel count

    # Pixels-on-lanes: free reshape of NCHW.  Cast once (bf16 halves DMA bytes).
    x3d = x_nchw.reshape(N, Cin, HW)
    if masked:
        x3d = jnp.pad(x3d, ((0, 0), (0, 0), (0, hw_pad - HW)))
    x3d = x3d.astype(compute_dtype)

    w1 = params["w1"].astype(compute_dtype)
    b1 = params["b1"].astype(jnp.float32)
    w2 = params["w2"].astype(compute_dtype)
    w3 = params["w3"].astype(compute_dtype)
    gamma = params["gamma"].astype(jnp.float32)
    beta = params["beta"].astype(jnp.float32)

    itemsize = jnp.dtype(compute_dtype).itemsize
    h2_bytes = N * num_tiles * ndf2 * tile_p * itemsize

    if h2_bytes <= max_fused_h2_bytes:
        # ---- Fused single call: persistent-h2 in VMEM, no conv1/conv2 recompute ----
        grid = (2, N, num_tiles)
        out = pl.pallas_call(
            functools.partial(_fused_kernel, num_tiles=num_tiles, tile_p=tile_p,
                              hw=HW, n_pixels=n_pixels, masked=masked, eps=eps),
            out_shape=jax.ShapeDtypeStruct((N, 1, hw_pad), jnp.float32),
            grid=grid,
            in_specs=[
                # x is only needed in pass 0; in pass 1 pin the index to block 0
                # so no per-step re-DMA happens.
                pl.BlockSpec((1, Cin, tile_p),
                             lambda p, n, t: (n * (1 - p), 0, t * (1 - p))),
                pl.BlockSpec((ndf, Cin), lambda p, n, t: (0, 0)),
                pl.BlockSpec((ndf, 1), lambda p, n, t: (0, 0)),
                pl.BlockSpec((ndf2, ndf), lambda p, n, t: (0, 0)),
                pl.BlockSpec((ndf2, 1), lambda p, n, t: (0, 0)),    # gamma
                pl.BlockSpec((ndf2, 1), lambda p, n, t: (0, 0)),    # beta
                pl.BlockSpec((1, ndf2), lambda p, n, t: (0, 0)),    # w3
            ],
            # During pass 0 all steps alias output block (0,0,0) (never flushed
            # before pass 1 rewrites it); pass 1 writes every block exactly once.
            out_specs=pl.BlockSpec((1, 1, tile_p),
                                   lambda p, n, t: (n * p, 0, t * p)),
            scratch_shapes=[
                pltpu.VMEM((N * num_tiles, ndf2, tile_p), compute_dtype),  # h2
                pltpu.VMEM((ndf2, 128), jnp.float32),                      # sum
                pltpu.VMEM((ndf2, 128), jnp.float32),                      # sum sq
            ],
            compiler_params=pltpu.CompilerParams(
                dimension_semantics=("arbitrary", "arbitrary", "arbitrary"),
                vmem_limit_bytes=int(min(48 * 2**20, h2_bytes + 20 * 2**20))),
        )(x3d, w1, b1, w2, gamma, beta, w3)
        return out[:, :, :HW].reshape(N, 1, H, W)

    # ---- Two-pass fallback: recompute conv1/conv2 in pass 2 ----
    grid2 = (N, num_tiles)
    x_spec = pl.BlockSpec((1, Cin, tile_p), lambda n, t: (n, 0, t))
    w1_spec = pl.BlockSpec((ndf, Cin), lambda n, t: (0, 0))
    b1_spec = pl.BlockSpec((ndf, 1), lambda n, t: (0, 0))
    w2_spec = pl.BlockSpec((ndf2, ndf), lambda n, t: (0, 0))
    acc_spec = pl.BlockSpec((ndf2, 128), lambda n, t: (0, 0))

    ch_sum, ch_ssq = pl.pallas_call(
        functools.partial(_stats_kernel, tile_p=tile_p, hw=HW, masked=masked),
        out_shape=(jax.ShapeDtypeStruct((ndf2, 128), jnp.float32),
                   jax.ShapeDtypeStruct((ndf2, 128), jnp.float32)),
        grid=grid2,
        in_specs=[x_spec, w1_spec, b1_spec, w2_spec],
        out_specs=(acc_spec, acc_spec),
        compiler_params=pltpu.CompilerParams(
            dimension_semantics=("arbitrary", "arbitrary"),
            vmem_limit_bytes=32 * 2**20),
    )(x3d, w1, b1, w2)

    # Fold BN into per-channel scale/shift; fold the scale into w2 for pass 2.
    mean = jnp.sum(ch_sum, axis=1, keepdims=True) / n_pixels
    var = jnp.maximum(jnp.sum(ch_ssq, axis=1, keepdims=True) / n_pixels
                      - mean * mean, 0.0)
    scale = gamma * jax.lax.rsqrt(var + eps)
    shift = beta - mean * scale
    w2s = (scale * params["w2"].astype(jnp.float32)).astype(compute_dtype)

    out = pl.pallas_call(
        _apply_kernel,
        out_shape=jax.ShapeDtypeStruct((N, 1, hw_pad), jnp.float32),
        grid=grid2,
        in_specs=[x_spec, w1_spec, b1_spec, w2_spec,
                  pl.BlockSpec((ndf2, 1), lambda n, t: (0, 0)),     # shift
                  pl.BlockSpec((1, ndf2), lambda n, t: (0, 0))],    # w3
        out_specs=pl.BlockSpec((1, 1, tile_p), lambda n, t: (n, 0, t)),
        compiler_params=pltpu.CompilerParams(
            dimension_semantics=("parallel", "parallel"),
            vmem_limit_bytes=32 * 2**20),
    )(x3d, w1, b1, w2s, shift, w3)
    return out[:, :, :HW].reshape(N, 1, H, W)


# ---------------------------------------------------------------------------
# Pure-JAX reference (identical semantics) and parameter init
# ---------------------------------------------------------------------------
def pixel_discriminator_reference(x_nchw, params, eps=_BN_EPS):
    N, Cin, H, W = x_nchw.shape
    X = jnp.transpose(x_nchw.reshape(N, Cin, H * W), (1, 0, 2)).reshape(Cin, -1)
    X = X.astype(jnp.float32)
    h1 = params["w1"] @ X + params["b1"]
    h1 = jnp.where(h1 > 0, h1, 0.2 * h1)
    h2 = params["w2"] @ h1
    mean = jnp.mean(h2, axis=1, keepdims=True)
    var = jnp.mean((h2 - mean) ** 2, axis=1, keepdims=True)
    h2n = (h2 - mean) * jax.lax.rsqrt(var + eps) * params["gamma"] + params["beta"]
    h3 = jnp.where(h2n > 0, h2n, 0.2 * h2n)
    out = params["w3"] @ h3                                   # (1, N*H*W), n-major
    return out.reshape(N, H, W)[:, None, :, :]


def init_params(key, input_nc, ndf=64):
    """Synthetic params matching PixelDiscriminator.__init__ (BatchNorm2d =>
    use_bias=False for conv2/conv3).  Column-vector layout for per-channel params."""
    k1, k2, k3, k4, k5 = jax.random.split(key, 5)
    f32 = jnp.float32
    return {
        "w1": 0.1 * jax.random.normal(k1, (ndf, input_nc), dtype=f32),
        "b1": 0.1 * jax.random.normal(k2, (ndf, 1), dtype=f32),
        "w2": 0.1 * jax.random.normal(k3, (2 * ndf, ndf), dtype=f32),
        "gamma": 1.0 + 0.1 * jax.random.normal(k4, (2 * ndf, 1), dtype=f32),
        "beta": 0.1 * jax.random.normal(k5, (2 * ndf, 1), dtype=f32),
        "w3": 0.1 * jax.random.normal(jax.random.fold_in(key, 7), (1, 2 * ndf),
                                      dtype=f32),
    }


if __name__ == "__main__":
    key = jax.random.PRNGKey(0)
    kx, kp = jax.random.split(key)

    N, Cin, H, W = 2, 4, 16, 16
    ndf = 64
    x = jax.random.normal(kx, (N, Cin, H, W), dtype=jnp.float32)
    params = init_params(kp, input_nc=Cin, ndf=ndf)

    ref = jax.block_until_ready(pixel_discriminator_reference(x, params))

    # 1) f32 compute on the fused (persistent-h2) path — tight check of the math.
    out_f32 = jax.block_until_ready(
        pixel_discriminator_forward(x, params, compute_dtype=jnp.float32))
    assert out_f32.shape == (N, 1, H, W), out_f32.shape
    np.testing.assert_allclose(np.asarray(out_f32), np.asarray(ref),
                               rtol=1e-3, atol=1e-3)

    # 2) f32 compute, forced two-pass recompute fallback path.
    out_2p = jax.block_until_ready(
        pixel_discriminator_forward(x, params, compute_dtype=jnp.float32,
                                    max_fused_h2_bytes=0))
    np.testing.assert_allclose(np.asarray(out_2p), np.asarray(ref),
                               rtol=1e-3, atol=1e-3)

    # 3) Default bf16 matmul path (native MXU dtype); compared against the f32
    #    reference with tolerance appropriate for bf16 + BatchNorm amplification.
    out_bf16 = jax.block_until_ready(pixel_discriminator_forward(x, params))
    np.testing.assert_allclose(np.asarray(out_bf16), np.asarray(ref),
                               rtol=1e-1, atol=1e-1)

    print("KERNEL_OK")
</pallas_src>

<mosaic_0001>
module attributes {stable_mosaic.version = 11 : i64} {
  func.func @_fused_kernel(%arg0: i32, %arg1: i32, %arg2: i32, %arg3: memref<1x4x256xf32, #tpu.memory_space<vmem>>, %arg4: memref<64x4xf32, #tpu.memory_space<vmem>>, %arg5: memref<64x1xf32, #tpu.memory_space<vmem>>, %arg6: memref<128x64xf32, #tpu.memory_space<vmem>>, %arg7: memref<128x1xf32, #tpu.memory_space<vmem>>, %arg8: memref<128x1xf32, #tpu.memory_space<vmem>>, %arg9: memref<1x128xf32, #tpu.memory_space<vmem>>, %arg10: memref<1x1x256xf32, #tpu.memory_space<vmem>>, %arg11: memref<2x128x256xf32, #tpu.memory_space<vmem>>, %arg12: memref<128x128xf32, #tpu.memory_space<vmem>>, %arg13: memref<128x128xf32, #tpu.memory_space<vmem>>) attributes {dimension_semantics = [#tpu.dimension_semantics<arbitrary>, #tpu.dimension_semantics<arbitrary>, #tpu.dimension_semantics<arbitrary>], iteration_bounds = array<i64: 2, 2, 1>, scalar_prefetch = 0 : i64, scratch_operands = 3 : i64, tpu.core_type = #tpu.core_type<tc>, window_params = [{transform_indices = @transform_0, window_bounds = array<i64: 1, 4, 256>}, {pipeline_mode = #tpu.pipeline_mode<synchronous>, transform_indices = @transform_1, window_bounds = array<i64: 64, 4>}, {pipeline_mode = #tpu.pipeline_mode<synchronous>, transform_indices = @transform_2, window_bounds = array<i64: 64, 1>}, {pipeline_mode = #tpu.pipeline_mode<synchronous>, transform_indices = @transform_3, window_bounds = array<i64: 128, 64>}, {pipeline_mode = #tpu.pipeline_mode<synchronous>, transform_indices = @transform_4, window_bounds = array<i64: 128, 1>}, {pipeline_mode = #tpu.pipeline_mode<synchronous>, transform_indices = @transform_5, window_bounds = array<i64: 128, 1>}, {pipeline_mode = #tpu.pipeline_mode<synchronous>, transform_indices = @transform_6, window_bounds = array<i64: 1, 128>}, {transform_indices = @transform_7, window_bounds = array<i64: 1, 1, 256>}]} {
    %c1_i32 = arith.constant 1 : i32
    %0 = arith.muli %arg1, %c1_i32 : i32
    %1 = arith.addi %0, %arg2 : i32
    %c0_i32 = arith.constant 0 : i32
    %2 = arith.cmpi eq, %arg0, %c0_i32 : i32
    %3 = arith.extui %2 : i1 to i32
    %c0_i32_0 = arith.constant 0 : i32
    %4 = arith.cmpi ne, %3, %c0_i32_0 : i32
    scf.if %4 {
      %c0_i32_3 = arith.constant 0 : i32
      %8 = arith.cmpi eq, %arg1, %c0_i32_3 : i32
      %c0_i32_4 = arith.constant 0 : i32
      %9 = arith.cmpi eq, %arg2, %c0_i32_4 : i32
      %10 = arith.andi %8, %9 : i1
      %11 = arith.extui %10 : i1 to i32
      %c0_i32_5 = arith.constant 0 : i32
      %12 = arith.cmpi ne, %11, %c0_i32_5 : i32
      scf.if %12 {
        %cst_26 = arith.constant 0.000000e+00 : f32
        %41 = vector.broadcast %cst_26 : f32 to vector<128x128xf32>
        %c0_27 = arith.constant 0 : index
        %c0_28 = arith.constant 0 : index
        %42 = vector.load %arg12[%c0_27, %c0_28] : memref<128x128xf32, #tpu.memory_space<vmem>>, vector<128x128xf32>
        tpu.vector_store %arg12[%c0_27, %c0_28], %41 {strides = array<i32>} : memref<128x128xf32, #tpu.memory_space<vmem>>, vector<128x128xf32>,
        %cst_29 = arith.constant 0.000000e+00 : f32
        %43 = vector.broadcast %cst_29 : f32 to vector<128x128xf32>
        %c0_30 = arith.constant 0 : index
        %c0_31 = arith.constant 0 : index
        %44 = vector.load %arg13[%c0_30, %c0_31] : memref<128x128xf32, #tpu.memory_space<vmem>>, vector<128x128xf32>
        tpu.vector_store %arg13[%c0_30, %c0_31], %43 {strides = array<i32>} : memref<128x128xf32, #tpu.memory_space<vmem>>, vector<128x128xf32>,
      } else {
      }
      %c0 = arith.constant 0 : index
      %c0_6 = arith.constant 0 : index
      %c0_7 = arith.constant 0 : index
      %13 = vector.load %arg3[%c0, %c0_6, %c0_7] : memref<1x4x256xf32, #tpu.memory_space<vmem>>, vector<1x4x256xf32>
      %14 = vector.shape_cast %13 : vector<1x4x256xf32> to vector<4x256xf32>
      %c0_8 = arith.constant 0 : index
      %c0_9 = arith.constant 0 : index
      %15 = vector.load %arg4[%c0_8, %c0_9] : memref<64x4xf32, #tpu.memory_space<vmem>>, vector<64x4xf32>
      %cst = arith.constant dense<0.000000e+00> : vector<64x256xf32>
      %16 = tpu.matmul %15, %14, %cst {dimension_numbers = #tpu.dot_dimension_numbers<[1], [0], [0], [1], [0, 0, 1, 1], [], []>} : vector<64x4xf32>, vector<4x256xf32>, vector<64x256xf32> -> vector<64x256xf32>
      %c0_10 = arith.constant 0 : index
      %c0_11 = arith.constant 0 : index
      %17 = vector.load %arg5[%c0_10, %c0_11] : memref<64x1xf32, #tpu.memory_space<vmem>>, vector<64x1xf32>
      %18 = vector.broadcast %17 : vector<64x1xf32> to vector<64x256xf32>
      %19 = arith.addf %16, %18 : vector<64x256xf32>
      %cst_12 = arith.constant 2.000000e-01 : f32
      %20 = vector.broadcast %cst_12 : f32 to vector<64x256xf32>
      %21 = arith.mulf %20, %19 : vector<64x256xf32>
      %22 = arith.maximumf %19, %21 : vector<64x256xf32>
      %c0_13 = arith.constant 0 : index
      %c0_14 = arith.constant 0 : index
      %23 = vector.load %arg6[%c0_13, %c0_14] : memref<128x64xf32, #tpu.memory_space<vmem>>, vector<128x64xf32>
      %cst_15 = arith.constant dense<0.000000e+00> : vector<128x256xf32>
      %24 = tpu.matmul %23, %22, %cst_15 {dimension_numbers = #tpu.dot_dimension_numbers<[1], [0], [0], [1], [0, 0, 1, 1], [], []>} : vector<128x64xf32>, vector<64x256xf32>, vector<128x256xf32> -> vector<128x256xf32>
      %25 = arith.index_cast %1 : i32 to index
      %c0_16 = arith.constant 0 : index
      %c0_17 = arith.constant 0 : index
      %26 = vector.load %arg11[%25, %c0_16, %c0_17] : memref<2x128x256xf32, #tpu.memory_space<vmem>>, vector<1x128x256xf32>
      %27 = vector.shape_cast %26 : vector<1x128x256xf32> to vector<128x256xf32>
      %28 = vector.shape_cast %24 : vector<128x256xf32> to vector<1x128x256xf32>
      tpu.vector_store %arg11[%25, %c0_16, %c0_17], %28 {strides = array<i32>} : memref<2x128x256xf32, #tpu.memory_space<vmem>>, vector<1x128x256xf32>,
      %c0_18 = arith.constant 0 : index
      %c0_19 = arith.constant 0 : index
      %29 = vector.load %arg12[%c0_18, %c0_19] : memref<128x128xf32, #tpu.memory_space<vmem>>, vector<128x128xf32>
      %c0_20 = arith.constant 0 : index
      %c0_21 = arith.constant 0 : index
      %30 = vector.load %arg13[%c0_20, %c0_21] : memref<128x128xf32, #tpu.memory_space<vmem>>, vector<128x128xf32>
      %31 = vector.extract_strided_slice %24 {offsets = [0, 0], sizes = [128, 128], strides = [1, 1]} : vector<128x256xf32> to vector<128x128xf32>
      %32 = arith.addf %29, %31 : vector<128x128xf32>
      %33 = arith.mulf %31, %31 : vector<128x128xf32>
      %34 = arith.addf %30, %33 : vector<128x128xf32>
      %35 = vector.extract_strided_slice %24 {offsets = [0, 128], sizes = [128, 128], strides = [1, 1]} : vector<128x256xf32> to vector<128x128xf32>
      %36 = arith.addf %32, %35 : vector<128x128xf32>
      %37 = arith.mulf %35, %35 : vector<128x128xf32>
      %38 = arith.addf %34, %37 : vector<128x128xf32>
      %c0_22 = arith.constant 0 : index
      %c0_23 = arith.constant 0 : index
      %39 = vector.load %arg12[%c0_22, %c0_23] : memref<128x128xf32, #tpu.memory_space<vmem>>, vector<128x128xf32>
      tpu.vector_store %arg12[%c0_22, %c0_23], %36 {strides = array<i32>} : memref<128x128xf32, #tpu.memory_space<vmem>>, vector<128x128xf32>,
      %c0_24 = arith.constant 0 : index
      %c0_25 = arith.constant 0 : index
      %40 = vector.load %arg13[%c0_24, %c0_25] : memref<128x128xf32, #tpu.memory_space<vmem>>, vector<128x128xf32>
      tpu.vector_store %arg13[%c0_24, %c0_25], %38 {strides = array<i32>} : memref<128x128xf32, #tpu.memory_space<vmem>>, vector<128x128xf32>,
    } else {
    }
    %c1_i32_1 = arith.constant 1 : i32
    %5 = arith.cmpi eq, %arg0, %c1_i32_1 : i32
    %6 = arith.extui %5 : i1 to i32
    %c0_i32_2 = arith.constant 0 : i32
    %7 = arith.cmpi ne, %6, %c0_i32_2 : i32
    scf.if %7 {
      %c0 = arith.constant 0 : index
      %c0_3 = arith.constant 0 : index
      %8 = vector.load %arg12[%c0, %c0_3] : memref<128x128xf32, #tpu.memory_space<vmem>>, vector<128x128xf32>
      %cst = arith.constant dense<0.000000e+00> : vector<128xf32>
      %9 = vector.multi_reduction <add>, %8, %cst [1] : vector<128x128xf32> to vector<128xf32>
      %10 = vector.shape_cast %9 : vector<128xf32> to vector<128x1xf32>
      %cst_4 = arith.constant 0.001953125 : f32
      %11 = vector.broadcast %cst_4 : f32 to vector<128x1xf32>
      %12 = arith.mulf %10, %11 : vector<128x1xf32>
      %c0_5 = arith.constant 0 : index
      %c0_6 = arith.constant 0 : index
      %13 = vector.load %arg13[%c0_5, %c0_6] : memref<128x128xf32, #tpu.memory_space<vmem>>, vector<128x128xf32>
      %cst_7 = arith.constant dense<0.000000e+00> : vector<128xf32>
      %14 = vector.multi_reduction <add>, %13, %cst_7 [1] : vector<128x128xf32> to vector<128xf32>
      %15 = vector.shape_cast %14 : vector<128xf32> to vector<128x1xf32>
      %cst_8 = arith.constant 0.001953125 : f32
      %16 = vector.broadcast %cst_8 : f32 to vector<128x1xf32>
      %17 = arith.mulf %15, %16 : vector<128x1xf32>
      %18 = arith.mulf %12, %12 : vector<128x1xf32>
      %19 = arith.subf %17, %18 : vector<128x1xf32>
      %cst_9 = arith.constant 0.000000e+00 : f32
      %20 = vector.broadcast %cst_9 : f32 to vector<128x1xf32>
      %21 = arith.maximumf %19, %20 : vector<128x1xf32>
      %c0_10 = arith.constant 0 : index
      %c0_11 = arith.constant 0 : index
      %22 = vector.load %arg7[%c0_10, %c0_11] : memref<128x1xf32, #tpu.memory_space<vmem>>, vector<128x1xf32>
      %cst_12 = arith.constant 9.99999974E-6 : f32
      %23 = vector.broadcast %cst_12 : f32 to vector<128x1xf32>
      %24 = arith.addf %21, %23 : vector<128x1xf32>
      %25 = math.rsqrt %24 : vector<128x1xf32>
      %26 = arith.mulf %22, %25 : vector<128x1xf32>
      %c0_13 = arith.constant 0 : index
      %c0_14 = arith.constant 0 : index
      %27 = vector.load %arg8[%c0_13, %c0_14] : memref<128x1xf32, #tpu.memory_space<vmem>>, vector<128x1xf32>
      %28 = arith.mulf %12, %26 : vector<128x1xf32>
      %29 = arith.subf %27, %28 : vector<128x1xf32>
      %30 = arith.index_cast %1 : i32 to index
      %c0_15 = arith.constant 0 : index
      %c0_16 = arith.constant 0 : index
      %31 = vector.load %arg11[%30, %c0_15, %c0_16] : memref<2x128x256xf32, #tpu.memory_space<vmem>>, vector<1x128x256xf32>
      %32 = vector.shape_cast %31 : vector<1x128x256xf32> to vector<128x256xf32>
      %33 = vector.broadcast %26 : vector<128x1xf32> to vector<128x256xf32>
      %34 = arith.mulf %32, %33 : vector<128x256xf32>
      %35 = vector.broadcast %29 : vector<128x1xf32> to vector<128x256xf32>
      %36 = arith.addf %34, %35 : vector<128x256xf32>
      %cst_17 = arith.constant 2.000000e-01 : f32
      %37 = vector.broadcast %cst_17 : f32 to vector<128x256xf32>
      %38 = arith.mulf %37, %36 : vector<128x256xf32>
      %39 = arith.maximumf %36, %38 : vector<128x256xf32>
      %c0_18 = arith.constant 0 : index
      %c0_19 = arith.constant 0 : index
      %40 = vector.load %arg9[%c0_18, %c0_19] : memref<1x128xf32, #tpu.memory_space<vmem>>, vector<1x128xf32>
      %cst_20 = arith.constant dense<0.000000e+00> : vector<1x256xf32>
      %41 = tpu.matmul %40, %39, %cst_20 {dimension_numbers = #tpu.dot_dimension_numbers<[1], [0], [0], [1], [0, 0, 1, 1], [], []>} : vector<1x128xf32>, vector<128x256xf32>, vector<1x256xf32> -> vector<1x256xf32>
      %c0_21 = arith.constant 0 : index
      %c0_22 = arith.constant 0 : index
      %c0_23 = arith.constant 0 : index
      %42 = vector.load %arg10[%c0_21, %c0_22, %c0_23] : memref<1x1x256xf32, #tpu.memory_space<vmem>>, vector<1x1x256xf32>
      %43 = vector.shape_cast %42 : vector<1x1x256xf32> to vector<1x256xf32>
      %44 = vector.shape_cast %41 : vector<1x256xf32> to vector<1x1x256xf32>
      tpu.vector_store %arg10[%c0_21, %c0_22, %c0_23], %44 {strides = array<i32>} : memref<1x1x256xf32, #tpu.memory_space<vmem>>, vector<1x1x256xf32>,
    } else {
    }
    return
  }
  func.func @transform_0(%arg0: i32, %arg1: i32, %arg2: i32) -> (i32, i32, i32) {
    %c1_i32 = arith.constant 1 : i32
    %0 = arith.subi %c1_i32, %arg0 : i32
    %1 = arith.muli %arg1, %0 : i32
    %c1_i32_0 = arith.constant 1 : i32
    %2 = arith.subi %c1_i32_0, %arg0 : i32
    %3 = arith.muli %arg2, %2 : i32
    %c0_i32 = arith.constant 0 : i32
    %c0_i32_1 = arith.constant 0 : i32
    return %1, %c0_i32, %3 : i32, i32, i32
  }
  func.func @transform_1(%arg0: i32, %arg1: i32, %arg2: i32) -> (i32, i32) {
    %c0_i32 = arith.constant 0 : i32
    %c0_i32_0 = arith.constant 0 : i32
    %c0_i32_1 = arith.constant 0 : i32
    return %c0_i32, %c0_i32_0 : i32, i32
  }
  func.func @transform_2(%arg0: i32, %arg1: i32, %arg2: i32) -> (i32, i32) {
    %c0_i32 = arith.constant 0 : i32
    %c0_i32_0 = arith.constant 0 : i32
    %c0_i32_1 = arith.constant 0 : i32
    return %c0_i32, %c0_i32_0 : i32, i32
  }
  func.func @transform_3(%arg0: i32, %arg1: i32, %arg2: i32) -> (i32, i32) {
    %c0_i32 = arith.constant 0 : i32
    %c0_i32_0 = arith.constant 0 : i32
    %c0_i32_1 = arith.constant 0 : i32
    return %c0_i32, %c0_i32_0 : i32, i32
  }
  func.func @transform_4(%arg0: i32, %arg1: i32, %arg2: i32) -> (i32, i32) {
    %c0_i32 = arith.constant 0 : i32
    %c0_i32_0 = arith.constant 0 : i32
    %c0_i32_1 = arith.constant 0 : i32
    return %c0_i32, %c0_i32_0 : i32, i32
  }
  func.func @transform_5(%arg0: i32, %arg1: i32, %arg2: i32) -> (i32, i32) {
    %c0_i32 = arith.constant 0 : i32
    %c0_i32_0 = arith.constant 0 : i32
    %c0_i32_1 = arith.constant 0 : i32
    return %c0_i32, %c0_i32_0 : i32, i32
  }
  func.func @transform_6(%arg0: i32, %arg1: i32, %arg2: i32) -> (i32, i32) {
    %c0_i32 = arith.constant 0 : i32
    %c0_i32_0 = arith.constant 0 : i32
    %c0_i32_1 = arith.constant 0 : i32
    return %c0_i32, %c0_i32_0 : i32, i32
  }
  func.func @transform_7(%arg0: i32, %arg1: i32, %arg2: i32) -> (i32, i32, i32) {
    %0 = arith.muli %arg1, %arg0 : i32
    %1 = arith.muli %arg2, %arg0 : i32
    %c0_i32 = arith.constant 0 : i32
    %c0_i32_0 = arith.constant 0 : i32
    return %0, %c0_i32, %1 : i32, i32, i32
  }
}

</mosaic_0001>

<llo_original>
// kernel: tpu_custom_call.1
$region0: #{tpu_custom_call.1}
  #allocation0 [shape = 'u32[]', space=smem, size = 0x4, offset = 0x4, fixed_abs, tag = 'smem constant byte address 0x4 - core index']
  #allocation1 [shape = 'u32[144,128]{1,0:T(1,128)}', space=vmem, size = 0x12000, scoped, tag = 'internal scratch']
  #allocation2 [shape = 'f32[2,128,256]{2,1,0:T(8,128)}', space=vmem, size = 0x40000, scoped, tag = 'scratch operand']
  #allocation3 [shape = 'f32[128,128]{1,0:T(8,128)}', space=vmem, size = 0x10000, scoped, tag = 'scratch operand']
  #allocation4 [shape = 'f32[128,128]{1,0:T(8,128)}', space=vmem, size = 0x10000, scoped, tag = 'scratch operand']
  %s0 = inlined_call_operand.vmem [shape: f32[2,4,256], index: 0, kind: input, shape index: {}]
  %s1 = inlined_call_operand.vmem [shape: f32[64,4], index: 1, kind: input, shape index: {}]
  %s2 = inlined_call_operand.vmem [shape: f32[64,1], index: 2, kind: input, shape index: {}]
  %s3 = inlined_call_operand.vmem [shape: f32[128,64], index: 3, kind: input, shape index: {}]
  %s4 = inlined_call_operand.vmem [shape: f32[128,1], index: 4, kind: input, shape index: {}]
  %s5 = inlined_call_operand.vmem [shape: f32[128,1], index: 5, kind: input, shape index: {}]
  %s6 = inlined_call_operand.vmem [shape: f32[1,128], index: 6, kind: input, shape index: {}]
  %s7 = inlined_call_operand.hbm [shape: f32[2,1,256], index: 7, kind: output, shape index: {}]
  %s8 = sld [smem:[#allocation0]]
  $region73: #{tpu_custom_call.1} parent=0
    _
  %s10 = ssub.s32 1, %s8
  %s11 = scalar_select 0, %s10, %s8
  $region1: #{tpu_custom_call.1} parent=0
    #allocation5 [shape = 'u8[2048]{0}', space=vmem, size = 0x800, scoped, tag = 'output window, operand 0']
    #allocation6 [shape = 's32[2]{0}', space=sflag, size = 0x8, scoped, tag = 'scoped memory for tpu_custom_call.1']
    %12 = vsyncpa [#allocation6], 0
    %s13 = scalar_lea.sflag [#allocation6], 1
    %14 = vsyncpa %s13, 0
    loop: start=0, step=1, limit=6
    $region2: #{tpu_custom_call.1} parent=1 // loop_pre_header
      _
    $region3: #{tpu_custom_call.1} parent=1 // loop_header
      %s16 = sphi 0, %s20
      %p17 = scmp.ge.s32.totalorder %s16, 6
      %s23 = sphi 0, %s42
      %s24 = sphi 0, %s38
      %s25 = sphi 0, %s34
      %s26 = sphi 0, %s23
      %s27 = sphi 0, %s24
      %s28 = sphi 0, %s25
      %s29 = sphi 0, %s26
      %s30 = sphi 0, %s27
      %s31 = sphi 0, %s28
      %s53 = sphi 0, %s55
      %s56 = sphi 0, %s53
      %s57 = sphi 0, %s56
      %s73 = sphi 0, %s57
      %s77 = sphi 0, %s77
      %s79 = sphi 0, %s77
      %s80 = sphi 0, %s79
      %s94 = sphi 0, %s80
      %s98 = sphi 0, %s98
      %s100 = sphi 0, %s98
      %s101 = sphi 0, %s100
      %s115 = sphi 0, %s101
      %s119 = sphi 0, %s119
      %s121 = sphi 0, %s119
      %s122 = sphi 0, %s121
      %s136 = sphi 0, %s122
      %s140 = sphi 0, %s140
      %s142 = sphi 0, %s140
      %s143 = sphi 0, %s142
      %s157 = sphi 0, %s143
      %s161 = sphi 0, %s161
      %s163 = sphi 0, %s161
      %s164 = sphi 0, %s163
      %s178 = sphi 0, %s164
      %s182 = sphi 0, %s182
      %s184 = sphi 0, %s182
      %s185 = sphi 0, %s184
      %s199 = sphi 0, %s185
      %s211 = sphi 0, %s213
      %s214 = sphi 0, %s211
      %s215 = sphi 0, %s214
      %s231 = sphi 0, %s215
    $region4: #{tpu_custom_call.1} parent=1 // loop_header_branch
      %19 = sbr.rel (%p17) target = $region8
    $region5: #{tpu_custom_call.1} parent=1 // loop_body
      %s21 = ssub.s32 %s16, 1
      %s22 = ssub.s32 %s16, 2
      %s32 = sadd.s32 1, %s25
      %p33 = scmp.ge.s32.totalorder %s32, 1
      %s34 = scalar_select %p33, 0, %s32
      %s35 = sadd.s32 1, %s24
      %s36 = scalar_select %p33, %s35, %s24
      %p37 = scmp.ge.s32.totalorder %s36, 2
      %s38 = scalar_select %p37, 0, %s36
      %s39 = sadd.s32 1, %s23
      %s40 = scalar_select %p37, %s39, %s23
      %p41 = scmp.ge.s32.totalorder %s40, 2
      %s42 = scalar_select %p41, 0, %s40
      %s43 = ssub.s32 1, %s23
      %s44 = smul.u32 %s24, %s43
      %s45 = smul.u32 %s25, %s43
      %s46 = ssub.s32 1, %s42
      %s47 = smul.u32 %s38, %s46
      %s48 = smul.u32 %s34, %s46
      %s49 = ssub.s32 %s44, %s47
      %s50 = ssub.s32 %s45, %s48
      %s51 = sor.u32 %s49, %s50
      %p52 = scmp.eq.s32.totalorder %s51, 0
      %s54 = sadd.s32 %s53, 1
      %s55 = scalar_select %p52, %s53, %s54
      %p58 = pneg %p52
      %p59 = scmp.eq.s32.totalorder %s16, 3
      %p60 = por %p58, %p59
      %p61 = scmp.ne.s32.totalorder %s53, %s56
      %p62 = scmp.eq.s32.totalorder %s16, 0
      %p63 = por %p61, %p62
      %p64 = scmp.ne.s32.totalorder %s53, %s56
      %p65 = scmp.eq.s32.totalorder %s21, 3
      %p66 = por %p64, %p65
      %p67 = scmp.ne.s32.totalorder %s56, %s57
      %p68 = scmp.eq.s32.totalorder %s21, 0
      %p69 = por %p67, %p68
      %p70 = scmp.ne.s32.totalorder %s56, %s57
      %p71 = scmp.eq.s32.totalorder %s22, 3
      %p72 = por %p70, %p71
      %p74 = scmp.ne.s32.totalorder %s57, %s73
      %p75 = scmp.eq.s32.totalorder %s22, 0
      %p76 = por %p74, %p75
      %s78 = sadd.s32 %s77, 1
      %p81 = scmp.eq.s32.totalorder %s16, 3
      %p82 = scmp.ne.s32.totalorder %s77, %s79
      %p83 = scmp.eq.s32.totalorder %s16, 0
      %p84 = por %p82, %p83
      %p85 = scmp.ne.s32.totalorder %s77, %s79
      %p86 = scmp.eq.s32.totalorder %s21, 3
      %p87 = por %p85, %p86
      %p88 = scmp.ne.s32.totalorder %s79, %s80
      %p89 = scmp.eq.s32.totalorder %s21, 0
      %p90 = por %p88, %p89
      %p91 = scmp.ne.s32.totalorder %s79, %s80
      %p92 = scmp.eq.s32.totalorder %s22, 3
      %p93 = por %p91, %p92
      %p95 = scmp.ne.s32.totalorder %s80, %s94
      %p96 = scmp.eq.s32.totalorder %s22, 0
      %p97 = por %p95, %p96
      %s99 = sadd.s32 %s98, 1
      %p102 = scmp.eq.s32.totalorder %s16, 3
      %p103 = scmp.ne.s32.totalorder %s98, %s100
      %p104 = scmp.eq.s32.totalorder %s16, 0
      %p105 = por %p103, %p104
      %p106 = scmp.ne.s32.totalorder %s98, %s100
      %p107 = scmp.eq.s32.totalorder %s21, 3
      %p108 = por %p106, %p107
      %p109 = scmp.ne.s32.totalorder %s100, %s101
      %p110 = scmp.eq.s32.totalorder %s21, 0
      %p111 = por %p109, %p110
      %p112 = scmp.ne.s32.totalorder %s100, %s101
      %p113 = scmp.eq.s32.totalorder %s22, 3
      %p114 = por %p112, %p113
      %p116 = scmp.ne.s32.totalorder %s101, %s115
      %p117 = scmp.eq.s32.totalorder %s22, 0
      %p118 = por %p116, %p117
      %s120 = sadd.s32 %s119, 1
      %p123 = scmp.eq.s32.totalorder %s16, 3
      %p124 = scmp.ne.s32.totalorder %s119, %s121
      %p125 = scmp.eq.s32.totalorder %s16, 0
      %p126 = por %p124, %p125
      %p127 = scmp.ne.s32.totalorder %s119, %s121
      %p128 = scmp.eq.s32.totalorder %s21, 3
      %p129 = por %p127, %p128
      %p130 = scmp.ne.s32.totalorder %s121, %s122
      %p131 = scmp.eq.s32.totalorder %s21, 0
      %p132 = por %p130, %p131
      %p133 = scmp.ne.s32.totalorder %s121, %s122
      %p134 = scmp.eq.s32.totalorder %s22, 3
      %p135 = por %p133, %p134
      %p137 = scmp.ne.s32.totalorder %s122, %s136
      %p138 = scmp.eq.s32.totalorder %s22, 0
      %p139 = por %p137, %p138
      %s141 = sadd.s32 %s140, 1
      %p144 = scmp.eq.s32.totalorder %s16, 3
      %p145 = scmp.ne.s32.totalorder %s140, %s142
      %p146 = scmp.eq.s32.totalorder %s16, 0
      %p147 = por %p145, %p146
      %p148 = scmp.ne.s32.totalorder %s140, %s142
      %p149 = scmp.eq.s32.totalorder %s21, 3
      %p150 = por %p148, %p149
      %p151 = scmp.ne.s32.totalorder %s142, %s143
      %p152 = scmp.eq.s32.totalorder %s21, 0
      %p153 = por %p151, %p152
      %p154 = scmp.ne.s32.totalorder %s142, %s143
      %p155 = scmp.eq.s32.totalorder %s22, 3
      %p156 = por %p154, %p155
      %p158 = scmp.ne.s32.totalorder %s143, %s157
      %p159 = scmp.eq.s32.totalorder %s22, 0
      %p160 = por %p158, %p159
      %s162 = sadd.s32 %s161, 1
      %p165 = scmp.eq.s32.totalorder %s16, 3
      %p166 = scmp.ne.s32.totalorder %s161, %s163
      %p167 = scmp.eq.s32.totalorder %s16, 0
      %p168 = por %p166, %p167
      %p169 = scmp.ne.s32.totalorder %s161, %s163
      %p170 = scmp.eq.s32.totalorder %s21, 3
      %p171 = por %p169, %p170
      %p172 = scmp.ne.s32.totalorder %s163, %s164
      %p173 = scmp.eq.s32.totalorder %s21, 0
      %p174 = por %p172, %p173
      %p175 = scmp.ne.s32.totalorder %s163, %s164
      %p176 = scmp.eq.s32.totalorder %s22, 3
      %p177 = por %p175, %p176
      %p179 = scmp.ne.s32.totalorder %s164, %s178
      %p180 = scmp.eq.s32.totalorder %s22, 0
      %p181 = por %p179, %p180
      %s183 = sadd.s32 %s182, 1
      %p186 = scmp.eq.s32.totalorder %s16, 3
      %p187 = scmp.ne.s32.totalorder %s182, %s184
      %p188 = scmp.eq.s32.totalorder %s16, 0
      %p189 = por %p187, %p188
      %p190 = scmp.ne.s32.totalorder %s182, %s184
      %p191 = scmp.eq.s32.totalorder %s21, 3
      %p192 = por %p190, %p191
      %p193 = scmp.ne.s32.totalorder %s184, %s185
      %p194 = scmp.eq.s32.totalorder %s21, 0
      %p195 = por %p193, %p194
      %p196 = scmp.ne.s32.totalorder %s184, %s185
      %p197 = scmp.eq.s32.totalorder %s22, 3
      %p198 = por %p196, %p197
      %p200 = scmp.ne.s32.totalorder %s185, %s199
      %p201 = scmp.eq.s32.totalorder %s22, 0
      %p202 = por %p200, %p201
      %s203 = smul.u32 %s24, %s23
      %s204 = smul.u32 %s25, %s23
      %s205 = smul.u32 %s38, %s42
      %s206 = smul.u32 %s34, %s42
      %s207 = ssub.s32 %s203, %s205
      %s208 = ssub.s32 %s204, %s206
      %s209 = sor.u32 %s207, %s208
      %p210 = scmp.eq.s32.totalorder %s209, 0
      %s212 = sadd.s32 %s211, 1
      %s213 = scalar_select %p210, %s211, %s212
      %p216 = pneg %p210
      %p217 = scmp.eq.s32.totalorder %s16, 3
      %p218 = por %p216, %p217
      %p219 = scmp.ne.s32.totalorder %s211, %s214
      %p220 = scmp.eq.s32.totalorder %s16, 0
      %p221 = por %p219, %p220
      %p222 = scmp.ne.s32.totalorder %s211, %s214
      %p223 = scmp.eq.s32.totalorder %s21, 3
      %p224 = por %p222, %p223
      %p225 = scmp.ne.s32.totalorder %s214, %s215
      %p226 = scmp.eq.s32.totalorder %s21, 0
      %p227 = por %p225, %p226
      %p228 = scmp.ne.s32.totalorder %s214, %s215
      %p229 = scmp.eq.s32.totalorder %s22, 3
      %p230 = por %p228, %p229
      %p232 = scmp.ne.s32.totalorder %s215, %s231
      %p233 = scmp.eq.s32.totalorder %s22, 0
      %p234 = por %p232, %p233
      %p235 = scmp.le.s32.totalorder 1, %s16
      %p236 = scmp.lt.s32.totalorder %s16, 5
      %p237 = pnand %p235, %p236
      %p238 = pneg %p237
      // Predicated region
      $region9: #{tpu_custom_call.1} parent=5 // pred_check
        _
      $region10: #{tpu_custom_call.1} parent=5 // pred_check_branch
        %240 = sbr.rel (%p237) target = $region12
      $region11: #{tpu_custom_call.1} parent=5 // pred_region
        %s241 = ssub.s32 %s16, 1
        // Predicated region
        $region13: #{tpu_custom_call.1} parent=11 // pred_check
          %p242 = pneg %p90
        $region14: #{tpu_custom_call.1} parent=11 // pred_check_branch
          %244 = sbr.rel (%p242) target = $region16
        $region15: #{tpu_custom_call.1} parent=11 // pred_region
          _
        $region16: #{tpu_custom_call.1} parent=11 // pred_fallthru
          _
        // Predicated region
        $region17: #{tpu_custom_call.1} parent=11 // pred_check
          %p245 = pneg %p111
        $region18: #{tpu_custom_call.1} parent=11 // pred_check_branch
          %247 = sbr.rel (%p245) target = $region20
        $region19: #{tpu_custom_call.1} parent=11 // pred_region
          _
        $region20: #{tpu_custom_call.1} parent=11 // pred_fallthru
          _
        // Predicated region
        $region21: #{tpu_custom_call.1} parent=11 // pred_check
          %p248 = pneg %p132
        $region22: #{tpu_custom_call.1} parent=11 // pred_check_branch
          %250 = sbr.rel (%p248) target = $region24
        $region23: #{tpu_custom_call.1} parent=11 // pred_region
          _
        $region24: #{tpu_custom_call.1} parent=11 // pred_fallthru
          _
        // Predicated region
        $region25: #{tpu_custom_call.1} parent=11 // pred_check
          %p251 = pneg %p153
        $region26: #{tpu_custom_call.1} parent=11 // pred_check_branch
          %253 = sbr.rel (%p251) target = $region28
        $region27: #{tpu_custom_call.1} parent=11 // pred_region
          _
        $region28: #{tpu_custom_call.1} parent=11 // pred_fallthru
          _
        // Predicated region
        $region29: #{tpu_custom_call.1} parent=11 // pred_check
          %p254 = pneg %p174
        $region30: #{tpu_custom_call.1} parent=11 // pred_check_branch
          %256 = sbr.rel (%p254) target = $region32
        $region31: #{tpu_custom_call.1} parent=11 // pred_region
          _
        $region32: #{tpu_custom_call.1} parent=11 // pred_fallthru
          _
        // Predicated region
        $region33: #{tpu_custom_call.1} parent=11 // pred_check
          %p257 = pneg %p195
        $region34: #{tpu_custom_call.1} parent=11 // pred_check_branch
          %259 = sbr.rel (%p257) target = $region36
        $region35: #{tpu_custom_call.1} parent=11 // pred_region
          _
        $region36: #{tpu_custom_call.1} parent=11 // pred_fallthru
          _
      $region12: #{tpu_custom_call.1} parent=5 // pred_fallthru
        _
      %p260 = scmp.lt.s32.totalorder %s16, 4
      // Predicated region
      $region37: #{tpu_custom_call.1} parent=5 // pred_check
        %p261 = pneg %p260
      $region38: #{tpu_custom_call.1} parent=5 // pred_check_branch
        %263 = sbr.rel (%p261) target = $region40
      $region39: #{tpu_custom_call.1} parent=5 // pred_region
        // Predicated region
        $region41: #{tpu_custom_call.1} parent=39 // pred_check
          %p264 = pneg %p63
        $region42: #{tpu_custom_call.1} parent=39 // pred_check_branch
          %266 = sbr.rel (%p264) target = $region44
        $region43: #{tpu_custom_call.1} parent=39 // pred_region
          %s267 = ssub.s32 1, %s23
          %s268 = smul.u32 %s24, %s267
          %s269 = smul.u32 %s25, %s267
          %s270 = smul.u32 2, %s269
          %p271 = scmp.lt.s32.totalorder %s268, 1
          %s272 = scalar_select %p271, %s268, 1
          %p273 = scmp.lt.s32.totalorder %s270, 1
          %s274 = scalar_select %p273, %s270, 1
          %s275 = smul.addr %s272, 2
          %s276 = sadd.s32 %s274, %s275
          %s277 = smul.addr %s276, 4
          %s278 = scalar_lea.vmem %s0, %s277
          %s279 = ssub.s32 1, %s23
          %s280 = smul.u32 %s24, %s279
          %s281 = smul.u32 %s25, %s279
          %s282 = smul.u32 2, %s281
        $region44: #{tpu_custom_call.1} parent=39 // pred_fallthru
          _
      $region40: #{tpu_custom_call.1} parent=5 // pred_fallthru
        _
      %p283 = scmp.le.s32.totalorder 1, %s16
      %p284 = scmp.lt.s32.totalorder %s16, 5
      %p285 = pnand %p283, %p284
      %p286 = pneg %p285
      // Predicated region
      $region45: #{tpu_custom_call.1} parent=5 // pred_check
        _
      $region46: #{tpu_custom_call.1} parent=5 // pred_check_branch
        %288 = sbr.rel (%p285) target = $region48
      $region47: #{tpu_custom_call.1} parent=5 // pred_region
        %s289 = ssub.s32 %s16, 1
        %s290 = ssub.s32 1, %s26
        %s291 = smul.u32 %s27, %s290
        %s292 = smul.u32 %s28, %s290
        %s293 = smul.u32 2, %s292
        %p294 = scmp.lt.s32.totalorder %s291, 1
        %s295 = scalar_select %p294, %s291, 1
        %p296 = scmp.lt.s32.totalorder %s293, 1
        %s297 = scalar_select %p296, %s293, 1
        %s298 = smul.addr %s295, 2
        %s299 = sadd.s32 %s297, %s298
        %s300 = smul.addr %s299, 4
        %s301 = scalar_lea.vmem %s0, %s300
        %p302 = pneg %p69
        %p303 = pneg %p66
        %p304 = pneg %p90
        %p305 = pneg %p87
        %p306 = pneg %p111
        %p307 = pneg %p108
        %p308 = pneg %p132
        %p309 = pneg %p129
        %p310 = pneg %p153
        %p311 = pneg %p150
        %p312 = pneg %p174
        %p313 = pneg %p171
        %p314 = pneg %p195
        %p315 = pneg %p192
        %p316 = pneg %p227
        %p317 = pneg %p224
        %s318 = sand.u32 %s214, 1
        %s319 = scalar_lea.sflag [#allocation6], %s318
        %s320 = sand.u32 %s214, 1
        %s321 = smul.addr %s320, 2
        %s322 = scalar_lea.vmem [#allocation5], %s321
        %s323 = ssub.s32 1, %s26
        %s324 = smul.u32 %s27, %s323
        %s325 = smul.u32 %s28, %s323
        %s326 = smul.u32 2, %s325
        %p327 = scmp.lt.s32.totalorder %s324, 1
        %s328 = scalar_select %p327, %s324, 1
        %p329 = scmp.lt.s32.totalorder %s326, 1
        %s330 = scalar_select %p329, %s326, 1
        %s331 = smul.addr %s328, 2
        %s332 = sadd.s32 %s330, %s331
        %s333 = smul.addr %s332, 4
        %s334 = scalar_lea.vmem %s0, %s333
        %s335 = ssub.s32 1, %s26
        %s336 = smul.u32 %s27, %s335
        %s337 = smul.u32 %s28, %s335
        %s338 = smul.u32 2, %s337
        %s339 = smul.u32 %s27, %s26
        %s340 = smul.u32 %s28, %s26
        %s341 = smul.u32 2, %s340
        %s342 = sadd.s32 %s27, %s28
        %p343 = scmp.eq.s32.totalorder %s26, 0
        // Predicated region
        $region49: #{tpu_custom_call.1} parent=47 // pred_check
          %p344 = pneg %p343
        $region50: #{tpu_custom_call.1} parent=47 // pred_check_branch
          %346 = sbr.rel (%p344) target = $region52
        $region51: #{tpu_custom_call.1} parent=47 // pred_region
          %p347 = scmp.eq.s32.totalorder %s27, 0
          %p348 = scmp.eq.s32.totalorder %s28, 0
          %p349 = pnand %p347, %p348
          %p350 = pneg %p349
          // Predicated region
          $region53: #{tpu_custom_call.1} parent=51 // pred_check
            _
          $region54: #{tpu_custom_call.1} parent=51 // pred_check_branch
            %352 = sbr.rel (%p349) target = $region56
          $region55: #{tpu_custom_call.1} parent=51 // pred_region
            %353 = vst [vmem:[#allocation3] sm:$0xff] 0.0
            %354 = vst [vmem:[#allocation3 + $0x8] sm:$0xff] 0.0
            %355 = vst [vmem:[#allocation3 + $0x10] sm:$0xff] 0.0
            %356 = vst [vmem:[#allocation3 + $0x18] sm:$0xff] 0.0
            %357 = vst [vmem:[#allocation3 + $0x20] sm:$0xff] 0.0
            %358 = vst [vmem:[#allocation3 + $0x28] sm:$0xff] 0.0
            %359 = vst [vmem:[#allocation3 + $0x30] sm:$0xff] 0.0
            %360 = vst [vmem:[#allocation3 + $0x38] sm:$0xff] 0.0
            %361 = vst [vmem:[#allocation3 + $0x40] sm:$0xff] 0.0
            %362 = vst [vmem:[#allocation3 + $0x48] sm:$0xff] 0.0
            %363 = vst [vmem:[#allocation3 + $0x50] sm:$0xff] 0.0
            %364 = vst [vmem:[#allocation3 + $0x58] sm:$0xff] 0.0
            %365 = vst [vmem:[#allocation3 + $0x60] sm:$0xff] 0.0
            %366 = vst [vmem:[#allocation3 + $0x68] sm:$0xff] 0.0
            %367 = vst [vmem:[#allocation3 + $0x70] sm:$0xff] 0.0
            %368 = vst [vmem:[#allocation3 + $0x78] sm:$0xff] 0.0
            %369 = vst [vmem:[#allocation4] sm:$0xff] 0.0
            %370 = vst [vmem:[#allocation4 + $0x8] sm:$0xff] 0.0
            %371 = vst [vmem:[#allocation4 + $0x10] sm:$0xff] 0.0
            %372 = vst [vmem:[#allocation4 + $0x18] sm:$0xff] 0.0
            %373 = vst [vmem:[#allocation4 + $0x20] sm:$0xff] 0.0
            %374 = vst [vmem:[#allocation4 + $0x28] sm:$0xff] 0.0
            %375 = vst [vmem:[#allocation4 + $0x30] sm:$0xff] 0.0
            %376 = vst [vmem:[#allocation4 + $0x38] sm:$0xff] 0.0
            %377 = vst [vmem:[#allocation4 + $0x40] sm:$0xff] 0.0
            %378 = vst [vmem:[#allocation4 + $0x48] sm:$0xff] 0.0
            %379 = vst [vmem:[#allocation4 + $0x50] sm:$0xff] 0.0
            %380 = vst [vmem:[#allocation4 + $0x58] sm:$0xff] 0.0
            %381 = vst [vmem:[#allocation4 + $0x60] sm:$0xff] 0.0
            %382 = vst [vmem:[#allocation4 + $0x68] sm:$0xff] 0.0
            %383 = vst [vmem:[#allocation4 + $0x70] sm:$0xff] 0.0
            %384 = vst [vmem:[#allocation4 + $0x78] sm:$0xff] 0.0
          $region56: #{tpu_custom_call.1} parent=51 // pred_fallthru
            _
          %v385 = vld [vmem:[%s334] sm:$0xff]
          %v386 = vld [vmem:[%s1] sm:$0xff]
          %v387 = vld [vmem:[%s1 + $0x8] sm:$0xff]
          %v388 = vld [vmem:[%s1 + $0x10] sm:$0xff]
          %v389 = vld [vmem:[%s1 + $0x18] sm:$0xff]
          %v390 = vld [vmem:[%s1 + $0x20] sm:$0xff]
          %v391 = vld [vmem:[%s1 + $0x28] sm:$0xff]
          %v392 = vld [vmem:[%s1 + $0x30] sm:$0xff]
          %v393 = vld [vmem:[%s1 + $0x38] sm:$0xff]
          %v394 = vld [vmem:[%s2] sm:$0xff]
          %v395 = vld [vmem:[%s2 + $0x8] sm:$0xff]
          %v396 = vld [vmem:[%s2 + $0x10] sm:$0xff]
          %v397 = vld [vmem:[%s2 + $0x18] sm:$0xff]
          %v398 = vld [vmem:[%s2 + $0x20] sm:$0xff]
          %v399 = vld [vmem:[%s2 + $0x28] sm:$0xff]
          %v400 = vld [vmem:[%s2 + $0x30] sm:$0xff]
          %v401 = vld [vmem:[%s2 + $0x38] sm:$0xff]
          %403 = vset.pattern.permute.xlu0 0
          %404 = vperm.xlu0 %403, %v394
          %v405 = vpop.permute.xlu0 %404
          %408 = vset.pattern.permute.xlu0 0
          %409 = vperm.xlu0 %408, %v395
          %v410 = vpop.permute.xlu0 %409
          %413 = vset.pattern.permute.xlu0 0
          %414 = vperm.xlu0 %413, %v396
          %v415 = vpop.permute.xlu0 %414
          %418 = vset.pattern.permute.xlu0 0
          %419 = vperm.xlu0 %418, %v397
          %v420 = vpop.permute.xlu0 %419
          %423 = vset.pattern.permute.xlu0 0
          %424 = vperm.xlu0 %423, %v398
          %v425 = vpop.permute.xlu0 %424
          %428 = vset.pattern.permute.xlu0 0
          %429 = vperm.xlu0 %428, %v399
          %v430 = vpop.permute.xlu0 %429
          %433 = vset.pattern.permute.xlu0 0
          %434 = vperm.xlu0 %433, %v400
          %v435 = vpop.permute.xlu0 %434
          %438 = vset.pattern.permute.xlu0 0
          %439 = vperm.xlu0 %438, %v401
          %v440 = vpop.permute.xlu0 %439
          %v443 = vcombine.high %v385, %v385
          %vm444 = vcmask 31744
          %v446 = vsel %vm444, %v386, 0
          %v449 = vsel %vm444, %v387, 0
          %v452 = vsel %vm444, %v388, 0
          %v455 = vsel %vm444, %v389, 0
          %v458 = vsel %vm444, %v390, 0
          %v461 = vsel %vm444, %v391, 0
          %v464 = vsel %vm444, %v392, 0
          %v467 = vsel %vm444, %v393, 0
          %vm469 = vcmask 1043456
          %v470 = vsel %vm469, %v385, 0
          %v472 = vsel %vm469, %v443, 0
          %474 = vmatprep.subr.mxu0 %v472
          %475 = vmatpush1.msra.mxu0 %v470
          %476 = vmatprep.subr.mxu0 0.0
          %477 = vmatpush1.msra.mxu0 0.0
          %478 = vmatprep.subr.mxu0 0.0
          %479 = vmatpush1.msra.mxu0 0.0
          %480 = vmatprep.subr.mxu0 0.0
          %481 = vmatpush1.msra.mxu0 0.0
          %482 = vmatprep.subr.mxu0 0.0
          %483 = vmatpush1.msra.mxu0 0.0
          %484 = vmatprep.subr.mxu0 0.0
          %485 = vmatpush1.msra.mxu0 0.0
          %486 = vmatprep.subr.mxu0 0.0
          %487 = vmatpush1.msra.mxu0 0.0
          %488 = vmatprep.subr.mxu0 0.0
          %489 = vmatpush1.msra.mxu0 0.0
          %490 = vmatprep.subr.mxu0 0.0
          %491 = vmatpush1.msra.mxu0 0.0
          %492 = vmatprep.subr.mxu0 0.0
          %493 = vmatpush1.msra.mxu0 0.0
          %494 = vmatprep.subr.mxu0 0.0
          %495 = vmatpush1.msra.mxu0 0.0
          %496 = vmatprep.subr.mxu0 0.0
          %497 = vmatpush1.msra.mxu0 0.0
          %498 = vmatprep.subr.mxu0 0.0
          %499 = vmatpush1.msra.mxu0 0.0
          %500 = vmatprep.subr.mxu0 0.0
          %501 = vmatpush1.msra.mxu0 0.0
          %502 = vmatprep.subr.mxu0 0.0
          %503 = vmatpush1.msra.mxu0 0.0
          %504 = vmatprep.subr.mxu0 0.0
          %505 = vmatpush1.msra.mxu0 0.0
          %506 = vmatprep.subr.mxu0 0.0
          %507 = vmatpush1.msra.mxu0 0.0
          %508 = vmatprep.subr.mxu0 0.0
          %509 = vmatpush1.msra.mxu0 0.0
          %510 = vmatprep.subr.mxu0 0.0
          %511 = vmatpush1.msra.mxu0 0.0
          %512 = vmatprep.subr.mxu0 0.0
          %513 = vmatpush1.msra.mxu0 0.0
          %514 = vmatprep.subr.mxu0 0.0
          %515 = vmatpush1.msra.mxu0 0.0
          %516 = vmatprep.subr.mxu0 0.0
          %517 = vmatpush1.msra.mxu0 0.0
          %518 = vmatprep.subr.mxu0 0.0
          %519 = vmatpush1.msra.mxu0 0.0
          %520 = vmatprep.subr.mxu0 0.0
          %521 = vmatpush1.msra.mxu0 0.0
          %522 = vmatprep.subr.mxu0 0.0
          %523 = vmatpush1.msra.mxu0 0.0
          %524 = vmatprep.subr.mxu0 0.0
          %525 = vmatpush1.msra.mxu0 0.0
          %526 = vmatprep.subr.mxu0 0.0
          %527 = vmatpush1.msra.mxu0 0.0
          %528 = vmatprep.subr.mxu0 0.0
          %529 = vmatpush1.msra.mxu0 0.0
          %530 = vmatprep.subr.mxu0 0.0
          %531 = vmatpush1.msra.mxu0 0.0
          %532 = vmatprep.subr.mxu0 0.0
          %533 = vmatpush1.msra.mxu0 0.0
          %534 = vmatprep.subr.mxu0 0.0
          %535 = vmatpush1.msra.mxu0 0.0
          %536 = vmatprep.subr.mxu0 0.0
          %537 = vmatpush1.msra.mxu0 0.0
          %538 = vmatprep.mubr.f32.mxu0 0.0
          %539 = vmatmul.mubr.f32.gmra.mrb[0].mxu0 %v446
          %v540 = vpop.f32.mrb[0].mxu0
          %v541 = vadd.f32 %v405, %v540
          %v542 = vpop.f32.mrb[0].mxu0
          %v543 = vadd.f32 %v405, %v542
          %544 = vmatprep.mubr.f32.mxu0 0.0
          %545 = vmatmul.mubr.f32.gmra.mrb[0].mxu0 %v449
          %v546 = vpop.f32.mrb[0].mxu0
          %v547 = vadd.f32 %v410, %v546
          %v548 = vpop.f32.mrb[0].mxu0
          %v549 = vadd.f32 %v410, %v548
          %550 = vmatprep.mubr.f32.mxu0 0.0
          %551 = vmatmul.mubr.f32.gmra.mrb[0].mxu0 %v452
          %v552 = vpop.f32.mrb[0].mxu0
          %v553 = vadd.f32 %v415, %v552
          %v554 = vpop.f32.mrb[0].mxu0
          %v555 = vadd.f32 %v415, %v554
          %556 = vmatprep.mubr.f32.mxu0 0.0
          %557 = vmatmul.mubr.f32.gmra.mrb[0].mxu0 %v455
          %v558 = vpop.f32.mrb[0].mxu0
          %v559 = vadd.f32 %v420, %v558
          %v560 = vpop.f32.mrb[0].mxu0
          %v561 = vadd.f32 %v420, %v560
          %562 = vmatprep.mubr.f32.mxu0 0.0
          %563 = vmatmul.mubr.f32.gmra.mrb[0].mxu0 %v458
          %v564 = vpop.f32.mrb[0].mxu0
          %v565 = vadd.f32 %v425, %v564
          %v566 = vpop.f32.mrb[0].mxu0
          %v567 = vadd.f32 %v425, %v566
          %568 = vmatprep.mubr.f32.mxu0 0.0
          %569 = vmatmul.mubr.f32.gmra.mrb[0].mxu0 %v461
          %v570 = vpop.f32.mrb[0].mxu0
          %v571 = vadd.f32 %v430, %v570
          %v572 = vpop.f32.mrb[0].mxu0
          %v573 = vadd.f32 %v430, %v572
          %574 = vmatprep.mubr.f32.mxu0 0.0
          %575 = vmatmul.mubr.f32.gmra.mrb[0].mxu0 %v464
          %v576 = vpop.f32.mrb[0].mxu0
          %v577 = vadd.f32 %v435, %v576
          %v578 = vpop.f32.mrb[0].mxu0
          %v579 = vadd.f32 %v435, %v578
          %580 = vmatprep.mubr.f32.mxu0 0.0
          %581 = vmatmul.mubr.f32.gmra.mrb[0].mxu0 %v467
          %v582 = vpop.f32.mrb[0].mxu0
          %v583 = vadd.f32 %v440, %v582
          %v584 = vpop.f32.mrb[0].mxu0
          %v585 = vadd.f32 %v440, %v584
          %586 = vdwg.mxu0
          %v587 = vmul.f32 %v541, 0.2
          %v588 = vmul.f32 %v543, 0.2
          %v589 = vmul.f32 %v547, 0.2
          %v590 = vmul.f32 %v549, 0.2
          %v591 = vmul.f32 %v553, 0.2
          %v592 = vmul.f32 %v555, 0.2
          %v593 = vmul.f32 %v559, 0.2
          %v594 = vmul.f32 %v561, 0.2
          %v595 = vmul.f32 %v565, 0.2
          %v596 = vmul.f32 %v567, 0.2
          %v597 = vmul.f32 %v571, 0.2
          %v598 = vmul.f32 %v573, 0.2
          %v599 = vmul.f32 %v577, 0.2
          %v600 = vmul.f32 %v579, 0.2
          %v601 = vmul.f32 %v583, 0.2
          %v602 = vmul.f32 %v585, 0.2
          %v603 = vmax.f32 %v541, %v587
          %v604 = vmax.f32 %v543, %v588
          %v605 = vmax.f32 %v547, %v589
          %v606 = vmax.f32 %v549, %v590
          %v607 = vmax.f32 %v553, %v591
          %v608 = vmax.f32 %v555, %v592
          %v609 = vmax.f32 %v559, %v593
          %v610 = vmax.f32 %v561, %v594
          %v611 = vmax.f32 %v565, %v595
          %v612 = vmax.f32 %v567, %v596
          %v613 = vmax.f32 %v571, %v597
          %v614 = vmax.f32 %v573, %v598
          %v615 = vmax.f32 %v577, %v599
          %v616 = vmax.f32 %v579, %v600
          %v617 = vmax.f32 %v583, %v601
          %v618 = vmax.f32 %v585, %v602
          %v619 = vld [vmem:[%s3] sm:$0xff]
          %v620 = vld [vmem:[%s3 + $0x8] sm:$0xff]
          %v621 = vld [vmem:[%s3 + $0x10] sm:$0xff]
          %v622 = vld [vmem:[%s3 + $0x18] sm:$0xff]
          %v623 = vld [vmem:[%s3 + $0x20] sm:$0xff]
          %v624 = vld [vmem:[%s3 + $0x28] sm:$0xff]
          %v625 = vld [vmem:[%s3 + $0x30] sm:$0xff]
          %v626 = vld [vmem:[%s3 + $0x38] sm:$0xff]
          %v627 = vld [vmem:[%s3 + $0x40] sm:$0xff]
          %v628 = vld [vmem:[%s3 + $0x48] sm:$0xff]
          %v629 = vld [vmem:[%s3 + $0x50] sm:$0xff]
          %v630 = vld [vmem:[%s3 + $0x58] sm:$0xff]
          %v631 = vld [vmem:[%s3 + $0x60] sm:$0xff]
          %v632 = vld [vmem:[%s3 + $0x68] sm:$0xff]
          %v633 = vld [vmem:[%s3 + $0x70] sm:$0xff]
          %v634 = vld [vmem:[%s3 + $0x78] sm:$0xff]
          %vm635 = vcmask 523264
          %v637 = vsel %vm635, %v619, 0
          %v640 = vsel %vm635, %v620, 0
          %v643 = vsel %vm635, %v621, 0
          %v646 = vsel %vm635, %v622, 0
          %v649 = vsel %vm635, %v623, 0
          %v652 = vsel %vm635, %v624, 0
          %v655 = vsel %vm635, %v625, 0
          %v658 = vsel %vm635, %v626, 0
          %v661 = vsel %vm635, %v627, 0
          %v664 = vsel %vm635, %v628, 0
          %v667 = vsel %vm635, %v629, 0
          %v670 = vsel %vm635, %v630, 0
          %v673 = vsel %vm635, %v631, 0
          %v676 = vsel %vm635, %v632, 0
          %v679 = vsel %vm635, %v633, 0
          %v682 = vsel %vm635, %v634, 0
          %684 = vmatprep.subr.mxu0 %v604
          %685 = vmatpush1.msra.mxu0 %v603
          %686 = vmatprep.subr.mxu0 %v606
          %687 = vmatpush1.msra.mxu0 %v605
          %688 = vmatprep.subr.mxu0 %v608
          %689 = vmatpush1.msra.mxu0 %v607
          %690 = vmatprep.subr.mxu0 %v610
          %691 = vmatpush1.msra.mxu0 %v609
          %692 = vmatprep.subr.mxu0 %v612
          %693 = vmatpush1.msra.mxu0 %v611
          %694 = vmatprep.subr.mxu0 %v614
          %695 = vmatpush1.msra.mxu0 %v613
          %696 = vmatprep.subr.mxu0 %v616
          %697 = vmatpush1.msra.mxu0 %v615
          %698 = vmatprep.subr.mxu0 %v618
          %699 = vmatpush1.msra.mxu0 %v617
          %700 = vmatprep.subr.mxu0 0.0
          %701 = vmatpush1.msra.mxu0 0.0
          %702 = vmatprep.subr.mxu0 0.0
          %703 = vmatpush1.msra.mxu0 0.0
          %704 = vmatprep.subr.mxu0 0.0
          %705 = vmatpush1.msra.mxu0 0.0
          %706 = vmatprep.subr.mxu0 0.0
          %707 = vmatpush1.msra.mxu0 0.0
          %708 = vmatprep.subr.mxu0 0.0
          %709 = vmatpush1.msra.mxu0 0.0
          %710 = vmatprep.subr.mxu0 0.0
          %711 = vmatpush1.msra.mxu0 0.0
          %712 = vmatprep.subr.mxu0 0.0
          %713 = vmatpush1.msra.mxu0 0.0
          %714 = vmatprep.subr.mxu0 0.0
          %715 = vmatpush1.msra.mxu0 0.0
          %716 = vmatprep.subr.mxu0 0.0
          %717 = vmatpush1.msra.mxu0 0.0
          %718 = vmatprep.subr.mxu0 0.0
          %719 = vmatpush1.msra.mxu0 0.0
          %720 = vmatprep.subr.mxu0 0.0
          %721 = vmatpush1.msra.mxu0 0.0
          %722 = vmatprep.subr.mxu0 0.0
          %723 = vmatpush1.msra.mxu0 0.0
          %724 = vmatprep.subr.mxu0 0.0
          %725 = vmatpush1.msra.mxu0 0.0
          %726 = vmatprep.subr.mxu0 0.0
          %727 = vmatpush1.msra.mxu0 0.0
          %728 = vmatprep.subr.mxu0 0.0
          %729 = vmatpush1.msra.mxu0 0.0
          %730 = vmatprep.subr.mxu0 0.0
          %731 = vmatpush1.msra.mxu0 0.0
          %732 = vmatprep.subr.mxu0 0.0
          %733 = vmatpush1.msra.mxu0 0.0
          %734 = vmatprep.subr.mxu0 0.0
          %735 = vmatpush1.msra.mxu0 0.0
          %736 = vmatprep.subr.mxu0 0.0
          %737 = vmatpush1.msra.mxu0 0.0
          %738 = vmatprep.subr.mxu0 0.0
          %739 = vmatpush1.msra.mxu0 0.0
          %740 = vmatprep.subr.mxu0 0.0
          %741 = vmatpush1.msra.mxu0 0.0
          %742 = vmatprep.subr.mxu0 0.0
          %743 = vmatpush1.msra.mxu0 0.0
          %744 = vmatprep.subr.mxu0 0.0
          %745 = vmatpush1.msra.mxu0 0.0
          %746 = vmatprep.subr.mxu0 0.0
          %747 = vmatpush1.msra.mxu0 0.0
          %748 = vmatprep.mubr.f32.mxu0 0.0
          %749 = vmatmul.mubr.f32.gmra.mrb[0].mxu0 %v637
          %v750 = vpop.f32.mrb[0].mxu0
          %v751 = vadd.f32 0.0, %v750
          %v752 = vpop.f32.mrb[0].mxu0
          %v753 = vadd.f32 0.0, %v752
          %754 = vmatprep.mubr.f32.mxu0 0.0
          %755 = vmatmul.mubr.f32.gmra.mrb[0].mxu0 %v640
          %v756 = vpop.f32.mrb[0].mxu0
          %v757 = vadd.f32 0.0, %v756
          %v758 = vpop.f32.mrb[0].mxu0
          %v759 = vadd.f32 0.0, %v758
          %760 = vmatprep.mubr.f32.mxu0 0.0
          %761 = vmatmul.mubr.f32.gmra.mrb[0].mxu0 %v643
          %v762 = vpop.f32.mrb[0].mxu0
          %v763 = vadd.f32 0.0, %v762
          %v764 = vpop.f32.mrb[0].mxu0
          %v765 = vadd.f32 0.0, %v764
          %766 = vmatprep.mubr.f32.mxu0 0.0
          %767 = vmatmul.mubr.f32.gmra.mrb[0].mxu0 %v646
          %v768 = vpop.f32.mrb[0].mxu0
          %v769 = vadd.f32 0.0, %v768
          %v770 = vpop.f32.mrb[0].mxu0
          %v771 = vadd.f32 0.0, %v770
          %772 = vmatprep.mubr.f32.mxu0 0.0
          %773 = vmatmul.mubr.f32.gmra.mrb[0].mxu0 %v649
          %v774 = vpop.f32.mrb[0].mxu0
          %v775 = vadd.f32 0.0, %v774
          %v776 = vpop.f32.mrb[0].mxu0
          %v777 = vadd.f32 0.0, %v776
          %778 = vmatprep.mubr.f32.mxu0 0.0
          %779 = vmatmul.mubr.f32.gmra.mrb[0].mxu0 %v652
          %v780 = vpop.f32.mrb[0].mxu0
          %v781 = vadd.f32 0.0, %v780
          %v782 = vpop.f32.mrb[0].mxu0
          %v783 = vadd.f32 0.0, %v782
          %784 = vmatprep.mubr.f32.mxu0 0.0
          %785 = vmatmul.mubr.f32.gmra.mrb[0].mxu0 %v655
          %v786 = vpop.f32.mrb[0].mxu0
          %v787 = vadd.f32 0.0, %v786
          %v788 = vpop.f32.mrb[0].mxu0
          %v789 = vadd.f32 0.0, %v788
          %790 = vmatprep.mubr.f32.mxu0 0.0
          %791 = vmatmul.mubr.f32.gmra.mrb[0].mxu0 %v658
          %v792 = vpop.f32.mrb[0].mxu0
          %v793 = vadd.f32 0.0, %v792
          %v794 = vpop.f32.mrb[0].mxu0
          %v795 = vadd.f32 0.0, %v794
          %796 = vmatprep.mubr.f32.mxu0 0.0
          %797 = vmatmul.mubr.f32.gmra.mrb[0].mxu0 %v661
          %v798 = vpop.f32.mrb[0].mxu0
          %v799 = vadd.f32 0.0, %v798
          %v800 = vpop.f32.mrb[0].mxu0
          %v801 = vadd.f32 0.0, %v800
          %802 = vmatprep.mubr.f32.mxu0 0.0
          %803 = vmatmul.mubr.f32.gmra.mrb[0].mxu0 %v664
          %v804 = vpop.f32.mrb[0].mxu0
          %v805 = vadd.f32 0.0, %v804
          %v806 = vpop.f32.mrb[0].mxu0
          %v807 = vadd.f32 0.0, %v806
          %808 = vmatprep.mubr.f32.mxu0 0.0
          %809 = vmatmul.mubr.f32.gmra.mrb[0].mxu0 %v667
          %v810 = vpop.f32.mrb[0].mxu0
          %v811 = vadd.f32 0.0, %v810
          %v812 = vpop.f32.mrb[0].mxu0
          %v813 = vadd.f32 0.0, %v812
          %814 = vmatprep.mubr.f32.mxu0 0.0
          %815 = vmatmul.mubr.f32.gmra.mrb[0].mxu0 %v670
          %v816 = vpop.f32.mrb[0].mxu0
          %v817 = vadd.f32 0.0, %v816
          %v818 = vpop.f32.mrb[0].mxu0
          %v819 = vadd.f32 0.0, %v818
          %820 = vmatprep.mubr.f32.mxu0 0.0
          %821 = vmatmul.mubr.f32.gmra.mrb[0].mxu0 %v673
          %v822 = vpop.f32.mrb[0].mxu0
          %v823 = vadd.f32 0.0, %v822
          %v824 = vpop.f32.mrb[0].mxu0
          %v825 = vadd.f32 0.0, %v824
          %826 = vmatprep.mubr.f32.mxu0 0.0
          %827 = vmatmul.mubr.f32.gmra.mrb[0].mxu0 %v676
          %v828 = vpop.f32.mrb[0].mxu0
          %v829 = vadd.f32 0.0, %v828
          %v830 = vpop.f32.mrb[0].mxu0
          %v831 = vadd.f32 0.0, %v830
          %832 = vmatprep.mubr.f32.mxu0 0.0
          %833 = vmatmul.mubr.f32.gmra.mrb[0].mxu0 %v679
          %v834 = vpop.f32.mrb[0].mxu0
          %v835 = vadd.f32 0.0, %v834
          %v836 = vpop.f32.mrb[0].mxu0
          %v837 = vadd.f32 0.0, %v836
          %838 = vmatprep.mubr.f32.mxu0 0.0
          %839 = vmatmul.mubr.f32.gmra.mrb[0].mxu0 %v682
          %v840 = vpop.f32.mrb[0].mxu0
          %v841 = vadd.f32 0.0, %v840
          %v842 = vpop.f32.mrb[0].mxu0
          %v843 = vadd.f32 0.0, %v842
          %844 = vdwg.mxu0
          %s845 = smul.u32 %s342, 32
          %s846 = smul.addr %s845, 8
          %s847 = scalar_lea.vmem [#allocation2], %s846
          %848 = vst [vmem:[%s847] sm:$0xff] %v751
          %849 = vst [vmem:[%s847 + $0x8] sm:$0xff] %v753
          %850 = vst [vmem:[%s847 + $0x10] sm:$0xff] %v757
          %851 = vst [vmem:[%s847 + $0x18] sm:$0xff] %v759
          %852 = vst [vmem:[%s847 + $0x20] sm:$0xff] %v763
          %853 = vst [vmem:[%s847 + $0x28] sm:$0xff] %v765
          %854 = vst [vmem:[%s847 + $0x30] sm:$0xff] %v769
          %855 = vst [vmem:[%s847 + $0x38] sm:$0xff] %v771
          %856 = vst [vmem:[%s847 + $0x40] sm:$0xff] %v775
          %857 = vst [vmem:[%s847 + $0x48] sm:$0xff] %v777
          %858 = vst [vmem:[%s847 + $0x50] sm:$0xff] %v781
          %859 = vst [vmem:[%s847 + $0x58] sm:$0xff] %v783
          %860 = vst [vmem:[%s847 + $0x60] sm:$0xff] %v787
          %861 = vst [vmem:[%s847 + $0x68] sm:$0xff] %v789
          %862 = vst [vmem:[%s847 + $0x70] sm:$0xff] %v793
          %863 = vst [vmem:[%s847 + $0x78] sm:$0xff] %v795
          %864 = vst [vmem:[%s847 + $0x80] sm:$0xff] %v799
          %865 = vst [vmem:[%s847 + $0x88] sm:$0xff] %v801
          %866 = vst [vmem:[%s847 + $0x90] sm:$0xff] %v805
          %867 = vst [vmem:[%s847 + $0x98] sm:$0xff] %v807
          %868 = vst [vmem:[%s847 + $0xa0] sm:$0xff] %v811
          %869 = vst [vmem:[%s847 + $0xa8] sm:$0xff] %v813
          %870 = vst [vmem:[%s847 + $0xb0] sm:$0xff] %v817
          %871 = vst [vmem:[%s847 + $0xb8] sm:$0xff] %v819
          %872 = vst [vmem:[%s847 + $0xc0] sm:$0xff] %v823
          %873 = vst [vmem:[%s847 + $0xc8] sm:$0xff] %v825
          %874 = vst [vmem:[%s847 + $0xd0] sm:$0xff] %v829
          %875 = vst [vmem:[%s847 + $0xd8] sm:$0xff] %v831
          %876 = vst [vmem:[%s847 + $0xe0] sm:$0xff] %v835
          %877 = vst [vmem:[%s847 + $0xe8] sm:$0xff] %v837
          %878 = vst [vmem:[%s847 + $0xf0] sm:$0xff] %v841
          %879 = vst [vmem:[%s847 + $0xf8] sm:$0xff] %v843
          %v880 = vld [vmem:[#allocation3] sm:$0xff]
          %v881 = vld [vmem:[#allocation3 + $0x8] sm:$0xff]
          %v882 = vld [vmem:[#allocation3 + $0x10] sm:$0xff]
          %v883 = vld [vmem:[#allocation3 + $0x18] sm:$0xff]
          %v884 = vld [vmem:[#allocation3 + $0x20] sm:$0xff]
          %v885 = vld [vmem:[#allocation3 + $0x28] sm:$0xff]
          %v886 = vld [vmem:[#allocation3 + $0x30] sm:$0xff]
          %v887 = vld [vmem:[#allocation3 + $0x38] sm:$0xff]
          %v888 = vld [vmem:[#allocation3 + $0x40] sm:$0xff]
          %v889 = vld [vmem:[#allocation3 + $0x48] sm:$0xff]
          %v890 = vld [vmem:[#allocation3 + $0x50] sm:$0xff]
          %v891 = vld [vmem:[#allocation3 + $0x58] sm:$0xff]
          %v892 = vld [vmem:[#allocation3 + $0x60] sm:$0xff]
          %v893 = vld [vmem:[#allocation3 + $0x68] sm:$0xff]
          %v894 = vld [vmem:[#allocation3 + $0x70] sm:$0xff]
          %v895 = vld [vmem:[#allocation3 + $0x78] sm:$0xff]
          %v896 = vld [vmem:[#allocation4] sm:$0xff]
          %v897 = vld [vmem:[#allocation4 + $0x8] sm:$0xff]
          %v898 = vld [vmem:[#allocation4 + $0x10] sm:$0xff]
          %v899 = vld [vmem:[#allocation4 + $0x18] sm:$0xff]
          %v900 = vld [vmem:[#allocation4 + $0x20] sm:$0xff]
          %v901 = vld [vmem:[#allocation4 + $0x28] sm:$0xff]
          %v902 = vld [vmem:[#allocation4 + $0x30] sm:$0xff]
          %v903 = vld [vmem:[#allocation4 + $0x38] sm:$0xff]
          %v904 = vld [vmem:[#allocation4 + $0x40] sm:$0xff]
          %v905 = vld [vmem:[#allocation4 + $0x48] sm:$0xff]
          %v906 = vld [vmem:[#allocation4 + $0x50] sm:$0xff]
          %v907 = vld [vmem:[#allocation4 + $0x58] sm:$0xff]
          %v908 = vld [vmem:[#allocation4 + $0x60] sm:$0xff]
          %v909 = vld [vmem:[#allocation4 + $0x68] sm:$0xff]
          %v910 = vld [vmem:[#allocation4 + $0x70] sm:$0xff]
          %v911 = vld [vmem:[#allocation4 + $0x78] sm:$0xff]
          %v912 = vadd.f32 %v880, %v751
          %v913 = vadd.f32 %v881, %v757
          %v914 = vadd.f32 %v882, %v763
          %v915 = vadd.f32 %v883, %v769
          %v916 = vadd.f32 %v884, %v775
          %v917 = vadd.f32 %v885, %v781
          %v918 = vadd.f32 %v886, %v787
          %v919 = vadd.f32 %v887, %v793
          %v920 = vadd.f32 %v888, %v799
          %v921 = vadd.f32 %v889, %v805
          %v922 = vadd.f32 %v890, %v811
          %v923 = vadd.f32 %v891, %v817
          %v924 = vadd.f32 %v892, %v823
          %v925 = vadd.f32 %v893, %v829
          %v926 = vadd.f32 %v894, %v835
          %v927 = vadd.f32 %v895, %v841
          %v928 = vmul.f32 %v751, %v751
          %v929 = vmul.f32 %v757, %v757
          %v930 = vmul.f32 %v763, %v763
          %v931 = vmul.f32 %v769, %v769
          %v932 = vmul.f32 %v775, %v775
          %v933 = vmul.f32 %v781, %v781
          %v934 = vmul.f32 %v787, %v787
          %v935 = vmul.f32 %v793, %v793
          %v936 = vmul.f32 %v799, %v799
          %v937 = vmul.f32 %v805, %v805
          %v938 = vmul.f32 %v811, %v811
          %v939 = vmul.f32 %v817, %v817
          %v940 = vmul.f32 %v823, %v823
          %v941 = vmul.f32 %v829, %v829
          %v942 = vmul.f32 %v835, %v835
          %v943 = vmul.f32 %v841, %v841
          %v944 = vadd.f32 %v896, %v928
          %v945 = vadd.f32 %v897, %v929
          %v946 = vadd.f32 %v898, %v930
          %v947 = vadd.f32 %v899, %v931
          %v948 = vadd.f32 %v900, %v932
          %v949 = vadd.f32 %v901, %v933
          %v950 = vadd.f32 %v902, %v934
          %v951 = vadd.f32 %v903, %v935
          %v952 = vadd.f32 %v904, %v936
          %v953 = vadd.f32 %v905, %v937
          %v954 = vadd.f32 %v906, %v938
          %v955 = vadd.f32 %v907, %v939
          %v956 = vadd.f32 %v908, %v940
          %v957 = vadd.f32 %v909, %v941
          %v958 = vadd.f32 %v910, %v942
          %v959 = vadd.f32 %v911, %v943
          %v960 = vadd.f32 %v912, %v753
          %v961 = vadd.f32 %v913, %v759
          %v962 = vadd.f32 %v914, %v765
          %v963 = vadd.f32 %v915, %v771
          %v964 = vadd.f32 %v916, %v777
          %v965 = vadd.f32 %v917, %v783
          %v966 = vadd.f32 %v918, %v789
          %v967 = vadd.f32 %v919, %v795
          %v968 = vadd.f32 %v920, %v801
          %v969 = vadd.f32 %v921, %v807
          %v970 = vadd.f32 %v922, %v813
          %v971 = vadd.f32 %v923, %v819
          %v972 = vadd.f32 %v924, %v825
          %v973 = vadd.f32 %v925, %v831
          %v974 = vadd.f32 %v926, %v837
          %v975 = vadd.f32 %v927, %v843
          %v976 = vmul.f32 %v753, %v753
          %v977 = vmul.f32 %v759, %v759
          %v978 = vmul.f32 %v765, %v765
          %v979 = vmul.f32 %v771, %v771
          %v980 = vmul.f32 %v777, %v777
          %v981 = vmul.f32 %v783, %v783
          %v982 = vmul.f32 %v789, %v789
          %v983 = vmul.f32 %v795, %v795
          %v984 = vmul.f32 %v801, %v801
          %v985 = vmul.f32 %v807, %v807
          %v986 = vmul.f32 %v813, %v813
          %v987 = vmul.f32 %v819, %v819
          %v988 = vmul.f32 %v825, %v825
          %v989 = vmul.f32 %v831, %v831
          %v990 = vmul.f32 %v837, %v837
          %v991 = vmul.f32 %v843, %v843
          %v992 = vadd.f32 %v944, %v976
          %v993 = vadd.f32 %v945, %v977
          %v994 = vadd.f32 %v946, %v978
          %v995 = vadd.f32 %v947, %v979
          %v996 = vadd.f32 %v948, %v980
          %v997 = vadd.f32 %v949, %v981
          %v998 = vadd.f32 %v950, %v982
          %v999 = vadd.f32 %v951, %v983
          %v1000 = vadd.f32 %v952, %v984
          %v1001 = vadd.f32 %v953, %v985
          %v1002 = vadd.f32 %v954, %v986
          %v1003 = vadd.f32 %v955, %v987
          %v1004 = vadd.f32 %v956, %v988
          %v1005 = vadd.f32 %v957, %v989
          %v1006 = vadd.f32 %v958, %v990
          %v1007 = vadd.f32 %v959, %v991
          %1008 = vst [vmem:[#allocation3] sm:$0xff] %v960
          %1009 = vst [vmem:[#allocation3 + $0x8] sm:$0xff] %v961
          %1010 = vst [vmem:[#allocation3 + $0x10] sm:$0xff] %v962
          %1011 = vst [vmem:[#allocation3 + $0x18] sm:$0xff] %v963
          %1012 = vst [vmem:[#allocation3 + $0x20] sm:$0xff] %v964
          %1013 = vst [vmem:[#allocation3 + $0x28] sm:$0xff] %v965
          %1014 = vst [vmem:[#allocation3 + $0x30] sm:$0xff] %v966
          %1015 = vst [vmem:[#allocation3 + $0x38] sm:$0xff] %v967
          %1016 = vst [vmem:[#allocation3 + $0x40] sm:$0xff] %v968
          %1017 = vst [vmem:[#allocation3 + $0x48] sm:$0xff] %v969
          %1018 = vst [vmem:[#allocation3 + $0x50] sm:$0xff] %v970
          %1019 = vst [vmem:[#allocation3 + $0x58] sm:$0xff] %v971
          %1020 = vst [vmem:[#allocation3 + $0x60] sm:$0xff] %v972
          %1021 = vst [vmem:[#allocation3 + $0x68] sm:$0xff] %v973
          %1022 = vst [vmem:[#allocation3 + $0x70] sm:$0xff] %v974
          %1023 = vst [vmem:[#allocation3 + $0x78] sm:$0xff] %v975
          %1024 = vst [vmem:[#allocation4] sm:$0xff] %v992
          %1025 = vst [vmem:[#allocation4 + $0x8] sm:$0xff] %v993
          %1026 = vst [vmem:[#allocation4 + $0x10] sm:$0xff] %v994
          %1027 = vst [vmem:[#allocation4 + $0x18] sm:$0xff] %v995
          %1028 = vst [vmem:[#allocation4 + $0x20] sm:$0xff] %v996
          %1029 = vst [vmem:[#allocation4 + $0x28] sm:$0xff] %v997
          %1030 = vst [vmem:[#allocation4 + $0x30] sm:$0xff] %v998
          %1031 = vst [vmem:[#allocation4 + $0x38] sm:$0xff] %v999
          %1032 = vst [vmem:[#allocation4 + $0x40] sm:$0xff] %v1000
          %1033 = vst [vmem:[#allocation4 + $0x48] sm:$0xff] %v1001
          %1034 = vst [vmem:[#allocation4 + $0x50] sm:$0xff] %v1002
          %1035 = vst [vmem:[#allocation4 + $0x58] sm:$0xff] %v1003
          %1036 = vst [vmem:[#allocation4 + $0x60] sm:$0xff] %v1004
          %1037 = vst [vmem:[#allocation4 + $0x68] sm:$0xff] %v1005
          %1038 = vst [vmem:[#allocation4 + $0x70] sm:$0xff] %v1006
          %1039 = vst [vmem:[#allocation4 + $0x78] sm:$0xff] %v1007
        $region52: #{tpu_custom_call.1} parent=47 // pred_fallthru
          _
        %p1040 = scmp.eq.s32.totalorder %s26, 1
        // Predicated region
        $region57: #{tpu_custom_call.1} parent=47 // pred_check
          %p1041 = pneg %p1040
        $region58: #{tpu_custom_call.1} parent=47 // pred_check_branch
          %1043 = sbr.rel (%p1041) target = $region60
        $region59: #{tpu_custom_call.1} parent=47 // pred_region
          %v1044 = vld [vmem:[#allocation3] sm:$0xff]
          %v1045 = vld [vmem:[#allocation3 + $0x8] sm:$0xff]
          %v1046 = vld [vmem:[#allocation3 + $0x10] sm:$0xff]
          %v1047 = vld [vmem:[#allocation3 + $0x18] sm:$0xff]
          %v1048 = vld [vmem:[#allocation3 + $0x20] sm:$0xff]
          %v1049 = vld [vmem:[#allocation3 + $0x28] sm:$0xff]
          %v1050 = vld [vmem:[#allocation3 + $0x30] sm:$0xff]
          %v1051 = vld [vmem:[#allocation3 + $0x38] sm:$0xff]
          %v1052 = vld [vmem:[#allocation3 + $0x40] sm:$0xff]
          %v1053 = vld [vmem:[#allocation3 + $0x48] sm:$0xff]
          %v1054 = vld [vmem:[#allocation3 + $0x50] sm:$0xff]
          %v1055 = vld [vmem:[#allocation3 + $0x58] sm:$0xff]
          %v1056 = vld [vmem:[#allocation3 + $0x60] sm:$0xff]
          %v1057 = vld [vmem:[#allocation3 + $0x68] sm:$0xff]
          %v1058 = vld [vmem:[#allocation3 + $0x70] sm:$0xff]
          %v1059 = vld [vmem:[#allocation3 + $0x78] sm:$0xff]
          %1060 = vadd.xlane.f32.xlu0 %v1044
          %v1061 = vpop.xlane.xlu0 %1060
          %1062 = vadd.xlane.f32.xlu0 %v1045
          %v1063 = vpop.xlane.xlu0 %1062
          %1064 = vadd.xlane.f32.xlu0 %v1046
          %v1065 = vpop.xlane.xlu0 %1064
          %1066 = vadd.xlane.f32.xlu0 %v1047
          %v1067 = vpop.xlane.xlu0 %1066
          %1068 = vadd.xlane.f32.xlu0 %v1048
          %v1069 = vpop.xlane.xlu0 %1068
          %1070 = vadd.xlane.f32.xlu0 %v1049
          %v1071 = vpop.xlane.xlu0 %1070
          %1072 = vadd.xlane.f32.xlu0 %v1050
          %v1073 = vpop.xlane.xlu0 %1072
          %1074 = vadd.xlane.f32.xlu0 %v1051
          %v1075 = vpop.xlane.xlu0 %1074
          %1076 = vadd.xlane.f32.xlu0 %v1052
          %v1077 = vpop.xlane.xlu0 %1076
          %1078 = vadd.xlane.f32.xlu0 %v1053
          %v1079 = vpop.xlane.xlu0 %1078
          %1080 = vadd.xlane.f32.xlu0 %v1054
          %v1081 = vpop.xlane.xlu0 %1080
          %1082 = vadd.xlane.f32.xlu0 %v1055
          %v1083 = vpop.xlane.xlu0 %1082
          %1084 = vadd.xlane.f32.xlu0 %v1056
          %v1085 = vpop.xlane.xlu0 %1084
          %1086 = vadd.xlane.f32.xlu0 %v1057
          %v1087 = vpop.xlane.xlu0 %1086
          %1088 = vadd.xlane.f32.xlu0 %v1058
          %v1089 = vpop.xlane.xlu0 %1088
          %1090 = vadd.xlane.f32.xlu0 %v1059
          %v1091 = vpop.xlane.xlu0 %1090
          %v1092 = vmul.f32 %v1061, 0.001953125
          %v1093 = vmul.f32 %v1063, 0.001953125
          %v1094 = vmul.f32 %v1065, 0.001953125
          %v1095 = vmul.f32 %v1067, 0.001953125
          %v1096 = vmul.f32 %v1069, 0.001953125
          %v1097 = vmul.f32 %v1071, 0.001953125
          %v1098 = vmul.f32 %v1073, 0.001953125
          %v1099 = vmul.f32 %v1075, 0.001953125
          %v1100 = vmul.f32 %v1077, 0.001953125
          %v1101 = vmul.f32 %v1079, 0.001953125
          %v1102 = vmul.f32 %v1081, 0.001953125
          %v1103 = vmul.f32 %v1083, 0.001953125
          %v1104 = vmul.f32 %v1085, 0.001953125
          %v1105 = vmul.f32 %v1087, 0.001953125
          %v1106 = vmul.f32 %v1089, 0.001953125
          %v1107 = vmul.f32 %v1091, 0.001953125
          %v1108 = vld [vmem:[#allocation4] sm:$0xff]
          %v1109 = vld [vmem:[#allocation4 + $0x8] sm:$0xff]
          %v1110 = vld [vmem:[#allocation4 + $0x10] sm:$0xff]
          %v1111 = vld [vmem:[#allocation4 + $0x18] sm:$0xff]
          %v1112 = vld [vmem:[#allocation4 + $0x20] sm:$0xff]
          %v1113 = vld [vmem:[#allocation4 + $0x28] sm:$0xff]
          %v1114 = vld [vmem:[#allocation4 + $0x30] sm:$0xff]
          %v1115 = vld [vmem:[#allocation4 + $0x38] sm:$0xff]
          %v1116 = vld [vmem:[#allocation4 + $0x40] sm:$0xff]
          %v1117 = vld [vmem:[#allocation4 + $0x48] sm:$0xff]
          %v1118 = vld [vmem:[#allocation4 + $0x50] sm:$0xff]
          %v1119 = vld [vmem:[#allocation4 + $0x58] sm:$0xff]
          %v1120 = vld [vmem:[#allocation4 + $0x60] sm:$0xff]
          %v1121 = vld [vmem:[#allocation4 + $0x68] sm:$0xff]
          %v1122 = vld [vmem:[#allocation4 + $0x70] sm:$0xff]
          %v1123 = vld [vmem:[#allocation4 + $0x78] sm:$0xff]
          %1124 = vadd.xlane.f32.xlu0 %v1108
          %v1125 = vpop.xlane.xlu0 %1124
          %1126 = vadd.xlane.f32.xlu0 %v1109
          %v1127 = vpop.xlane.xlu0 %1126
          %1128 = vadd.xlane.f32.xlu0 %v1110
          %v1129 = vpop.xlane.xlu0 %1128
          %1130 = vadd.xlane.f32.xlu0 %v1111
          %v1131 = vpop.xlane.xlu0 %1130
          %1132 = vadd.xlane.f32.xlu0 %v1112
          %v1133 = vpop.xlane.xlu0 %1132
          %1134 = vadd.xlane.f32.xlu0 %v1113
          %v1135 = vpop.xlane.xlu0 %1134
          %1136 = vadd.xlane.f32.xlu0 %v1114
          %v1137 = vpop.xlane.xlu0 %1136
          %1138 = vadd.xlane.f32.xlu0 %v1115
          %v1139 = vpop.xlane.xlu0 %1138
          %1140 = vadd.xlane.f32.xlu0 %v1116
          %v1141 = vpop.xlane.xlu0 %1140
          %1142 = vadd.xlane.f32.xlu0 %v1117
          %v1143 = vpop.xlane.xlu0 %1142
          %1144 = vadd.xlane.f32.xlu0 %v1118
          %v1145 = vpop.xlane.xlu0 %1144
          %1146 = vadd.xlane.f32.xlu0 %v1119
          %v1147 = vpop.xlane.xlu0 %1146
          %1148 = vadd.xlane.f32.xlu0 %v1120
          %v1149 = vpop.xlane.xlu0 %1148
          %1150 = vadd.xlane.f32.xlu0 %v1121
          %v1151 = vpop.xlane.xlu0 %1150
          %1152 = vadd.xlane.f32.xlu0 %v1122
          %v1153 = vpop.xlane.xlu0 %1152
          %1154 = vadd.xlane.f32.xlu0 %v1123
          %v1155 = vpop.xlane.xlu0 %1154
          %v1156 = vmul.f32 %v1125, 0.001953125
          %v1157 = vmul.f32 %v1127, 0.001953125
          %v1158 = vmul.f32 %v1129, 0.001953125
          %v1159 = vmul.f32 %v1131, 0.001953125
          %v1160 = vmul.f32 %v1133, 0.001953125
          %v1161 = vmul.f32 %v1135, 0.001953125
          %v1162 = vmul.f32 %v1137, 0.001953125
          %v1163 = vmul.f32 %v1139, 0.001953125
          %v1164 = vmul.f32 %v1141, 0.001953125
          %v1165 = vmul.f32 %v1143, 0.001953125
          %v1166 = vmul.f32 %v1145, 0.001953125
          %v1167 = vmul.f32 %v1147, 0.001953125
          %v1168 = vmul.f32 %v1149, 0.001953125
          %v1169 = vmul.f32 %v1151, 0.001953125
          %v1170 = vmul.f32 %v1153, 0.001953125
          %v1171 = vmul.f32 %v1155, 0.001953125
          %v1172 = vmul.f32 %v1092, %v1092
          %v1173 = vmul.f32 %v1093, %v1093
          %v1174 = vmul.f32 %v1094, %v1094
          %v1175 = vmul.f32 %v1095, %v1095
          %v1176 = vmul.f32 %v1096, %v1096
          %v1177 = vmul.f32 %v1097, %v1097
          %v1178 = vmul.f32 %v1098, %v1098
          %v1179 = vmul.f32 %v1099, %v1099
          %v1180 = vmul.f32 %v1100, %v1100
          %v1181 = vmul.f32 %v1101, %v1101
          %v1182 = vmul.f32 %v1102, %v1102
          %v1183 = vmul.f32 %v1103, %v1103
          %v1184 = vmul.f32 %v1104, %v1104
          %v1185 = vmul.f32 %v1105, %v1105
          %v1186 = vmul.f32 %v1106, %v1106
          %v1187 = vmul.f32 %v1107, %v1107
          %v1188 = vsub.f32 %v1156, %v1172
          %v1189 = vsub.f32 %v1157, %v1173
          %v1190 = vsub.f32 %v1158, %v1174
          %v1191 = vsub.f32 %v1159, %v1175
          %v1192 = vsub.f32 %v1160, %v1176
          %v1193 = vsub.f32 %v1161, %v1177
          %v1194 = vsub.f32 %v1162, %v1178
          %v1195 = vsub.f32 %v1163, %v1179
          %v1196 = vsub.f32 %v1164, %v1180
          %v1197 = vsub.f32 %v1165, %v1181
          %v1198 = vsub.f32 %v1166, %v1182
          %v1199 = vsub.f32 %v1167, %v1183
          %v1200 = vsub.f32 %v1168, %v1184
          %v1201 = vsub.f32 %v1169, %v1185
          %v1202 = vsub.f32 %v1170, %v1186
          %v1203 = vsub.f32 %v1171, %v1187
          %v1204 = vmax.f32 %v1188, 0.0
          %v1205 = vmax.f32 %v1189, 0.0
          %v1206 = vmax.f32 %v1190, 0.0
          %v1207 = vmax.f32 %v1191, 0.0
          %v1208 = vmax.f32 %v1192, 0.0
          %v1209 = vmax.f32 %v1193, 0.0
          %v1210 = vmax.f32 %v1194, 0.0
          %v1211 = vmax.f32 %v1195, 0.0
          %v1212 = vmax.f32 %v1196, 0.0
          %v1213 = vmax.f32 %v1197, 0.0
          %v1214 = vmax.f32 %v1198, 0.0
          %v1215 = vmax.f32 %v1199, 0.0
          %v1216 = vmax.f32 %v1200, 0.0
          %v1217 = vmax.f32 %v1201, 0.0
          %v1218 = vmax.f32 %v1202, 0.0
          %v1219 = vmax.f32 %v1203, 0.0
          %v1220 = vld [vmem:[%s4] sm:$0xff]
          %v1221 = vld [vmem:[%s4 + $0x8] sm:$0xff]
          %v1222 = vld [vmem:[%s4 + $0x10] sm:$0xff]
          %v1223 = vld [vmem:[%s4 + $0x18] sm:$0xff]
          %v1224 = vld [vmem:[%s4 + $0x20] sm:$0xff]
          %v1225 = vld [vmem:[%s4 + $0x28] sm:$0xff]
          %v1226 = vld [vmem:[%s4 + $0x30] sm:$0xff]
          %v1227 = vld [vmem:[%s4 + $0x38] sm:$0xff]
          %v1228 = vld [vmem:[%s4 + $0x40] sm:$0xff]
          %v1229 = vld [vmem:[%s4 + $0x48] sm:$0xff]
          %v1230 = vld [vmem:[%s4 + $0x50] sm:$0xff]
          %v1231 = vld [vmem:[%s4 + $0x58] sm:$0xff]
          %v1232 = vld [vmem:[%s4 + $0x60] sm:$0xff]
          %v1233 = vld [vmem:[%s4 + $0x68] sm:$0xff]
          %v1234 = vld [vmem:[%s4 + $0x70] sm:$0xff]
          %v1235 = vld [vmem:[%s4 + $0x78] sm:$0xff]
          %v1236 = vadd.f32 %v1204, 1e-05
          %v1237 = vadd.f32 %v1205, 1e-05
          %v1238 = vadd.f32 %v1206, 1e-05
          %v1239 = vadd.f32 %v1207, 1e-05
          %v1240 = vadd.f32 %v1208, 1e-05
          %v1241 = vadd.f32 %v1209, 1e-05
          %v1242 = vadd.f32 %v1210, 1e-05
          %v1243 = vadd.f32 %v1211, 1e-05
          %v1244 = vadd.f32 %v1212, 1e-05
          %v1245 = vadd.f32 %v1213, 1e-05
          %v1246 = vadd.f32 %v1214, 1e-05
          %v1247 = vadd.f32 %v1215, 1e-05
          %v1248 = vadd.f32 %v1216, 1e-05
          %v1249 = vadd.f32 %v1217, 1e-05
          %v1250 = vadd.f32 %v1218, 1e-05
          %v1251 = vadd.f32 %v1219, 1e-05
          %v1252 = vrsqrt.pop %v1236
          %v1253 = vrsqrt.pop %v1237
          %v1254 = vrsqrt.pop %v1238
          %v1255 = vrsqrt.pop %v1239
          %v1256 = vrsqrt.pop %v1240
          %v1257 = vrsqrt.pop %v1241
          %v1258 = vrsqrt.pop %v1242
          %v1259 = vrsqrt.pop %v1243
          %v1260 = vrsqrt.pop %v1244
          %v1261 = vrsqrt.pop %v1245
          %v1262 = vrsqrt.pop %v1246
          %v1263 = vrsqrt.pop %v1247
          %v1264 = vrsqrt.pop %v1248
          %v1265 = vrsqrt.pop %v1249
          %v1266 = vrsqrt.pop %v1250
          %v1267 = vrsqrt.pop %v1251
          %v1268 = vmul.f32 %v1220, %v1252
          %v1269 = vmul.f32 %v1221, %v1253
          %v1270 = vmul.f32 %v1222, %v1254
          %v1271 = vmul.f32 %v1223, %v1255
          %v1272 = vmul.f32 %v1224, %v1256
          %v1273 = vmul.f32 %v1225, %v1257
          %v1274 = vmul.f32 %v1226, %v1258
          %v1275 = vmul.f32 %v1227, %v1259
          %v1276 = vmul.f32 %v1228, %v1260
          %v1277 = vmul.f32 %v1229, %v1261
          %v1278 = vmul.f32 %v1230, %v1262
          %v1279 = vmul.f32 %v1231, %v1263
          %v1280 = vmul.f32 %v1232, %v1264
          %v1281 = vmul.f32 %v1233, %v1265
          %v1282 = vmul.f32 %v1234, %v1266
          %v1283 = vmul.f32 %v1235, %v1267
          %v1284 = vld [vmem:[%s5] sm:$0xff]
          %v1285 = vld [vmem:[%s5 + $0x8] sm:$0xff]
          %v1286 = vld [vmem:[%s5 + $0x10] sm:$0xff]
          %v1287 = vld [vmem:[%s5 + $0x18] sm:$0xff]
          %v1288 = vld [vmem:[%s5 + $0x20] sm:$0xff]
          %v1289 = vld [vmem:[%s5 + $0x28] sm:$0xff]
          %v1290 = vld [vmem:[%s5 + $0x30] sm:$0xff]
          %v1291 = vld [vmem:[%s5 + $0x38] sm:$0xff]
          %v1292 = vld [vmem:[%s5 + $0x40] sm:$0xff]
          %v1293 = vld [vmem:[%s5 + $0x48] sm:$0xff]
          %v1294 = vld [vmem:[%s5 + $0x50] sm:$0xff]
          %v1295 = vld [vmem:[%s5 + $0x58] sm:$0xff]
          %v1296 = vld [vmem:[%s5 + $0x60] sm:$0xff]
          %v1297 = vld [vmem:[%s5 + $0x68] sm:$0xff]
          %v1298 = vld [vmem:[%s5 + $0x70] sm:$0xff]
          %v1299 = vld [vmem:[%s5 + $0x78] sm:$0xff]
          %v1300 = vmul.f32 %v1092, %v1268
          %v1301 = vmul.f32 %v1093, %v1269
          %v1302 = vmul.f32 %v1094, %v1270
          %v1303 = vmul.f32 %v1095, %v1271
          %v1304 = vmul.f32 %v1096, %v1272
          %v1305 = vmul.f32 %v1097, %v1273
          %v1306 = vmul.f32 %v1098, %v1274
          %v1307 = vmul.f32 %v1099, %v1275
          %v1308 = vmul.f32 %v1100, %v1276
          %v1309 = vmul.f32 %v1101, %v1277
          %v1310 = vmul.f32 %v1102, %v1278
          %v1311 = vmul.f32 %v1103, %v1279
          %v1312 = vmul.f32 %v1104, %v1280
          %v1313 = vmul.f32 %v1105, %v1281
          %v1314 = vmul.f32 %v1106, %v1282
          %v1315 = vmul.f32 %v1107, %v1283
          %v1316 = vsub.f32 %v1284, %v1300
          %v1317 = vsub.f32 %v1285, %v1301
          %v1318 = vsub.f32 %v1286, %v1302
          %v1319 = vsub.f32 %v1287, %v1303
          %v1320 = vsub.f32 %v1288, %v1304
          %v1321 = vsub.f32 %v1289, %v1305
          %v1322 = vsub.f32 %v1290, %v1306
          %v1323 = vsub.f32 %v1291, %v1307
          %v1324 = vsub.f32 %v1292, %v1308
          %v1325 = vsub.f32 %v1293, %v1309
          %v1326 = vsub.f32 %v1294, %v1310
          %v1327 = vsub.f32 %v1295, %v1311
          %v1328 = vsub.f32 %v1296, %v1312
          %v1329 = vsub.f32 %v1297, %v1313
          %v1330 = vsub.f32 %v1298, %v1314
          %v1331 = vsub.f32 %v1299, %v1315
          %s1332 = smul.u32 %s342, 32
          %s1333 = smul.addr %s1332, 8
          %s1334 = scalar_lea.vmem [#allocation2], %s1333
          %v1335 = vld [vmem:[%s1334] sm:$0xff]
          %v1336 = vld [vmem:[%s1334 + $0x8] sm:$0xff]
          %v1337 = vld [vmem:[%s1334 + $0x10] sm:$0xff]
          %v1338 = vld [vmem:[%s1334 + $0x18] sm:$0xff]
          %v1339 = vld [vmem:[%s1334 + $0x20] sm:$0xff]
          %v1340 = vld [vmem:[%s1334 + $0x28] sm:$0xff]
          %v1341 = vld [vmem:[%s1334 + $0x30] sm:$0xff]
          %v1342 = vld [vmem:[%s1334 + $0x38] sm:$0xff]
          %v1343 = vld [vmem:[%s1334 + $0x40] sm:$0xff]
          %v1344 = vld [vmem:[%s1334 + $0x48] sm:$0xff]
          %v1345 = vld [vmem:[%s1334 + $0x50] sm:$0xff]
          %v1346 = vld [vmem:[%s1334 + $0x58] sm:$0xff]
          %v1347 = vld [vmem:[%s1334 + $0x60] sm:$0xff]
          %v1348 = vld [vmem:[%s1334 + $0x68] sm:$0xff]
          %v1349 = vld [vmem:[%s1334 + $0x70] sm:$0xff]
          %v1350 = vld [vmem:[%s1334 + $0x78] sm:$0xff]
          %v1351 = vld [vmem:[%s1334 + $0x80] sm:$0xff]
          %v1352 = vld [vmem:[%s1334 + $0x88] sm:$0xff]
          %v1353 = vld [vmem:[%s1334 + $0x90] sm:$0xff]
          %v1354 = vld [vmem:[%s1334 + $0x98] sm:$0xff]
          %v1355 = vld [vmem:[%s1334 + $0xa0] sm:$0xff]
          %v1356 = vld [vmem:[%s1334 + $0xa8] sm:$0xff]
          %v1357 = vld [vmem:[%s1334 + $0xb0] sm:$0xff]
          %v1358 = vld [vmem:[%s1334 + $0xb8] sm:$0xff]
          %v1359 = vld [vmem:[%s1334 + $0xc0] sm:$0xff]
          %v1360 = vld [vmem:[%s1334 + $0xc8] sm:$0xff]
          %v1361 = vld [vmem:[%s1334 + $0xd0] sm:$0xff]
          %v1362 = vld [vmem:[%s1334 + $0xd8] sm:$0xff]
          %v1363 = vld [vmem:[%s1334 + $0xe0] sm:$0xff]
          %v1364 = vld [vmem:[%s1334 + $0xe8] sm:$0xff]
          %v1365 = vld [vmem:[%s1334 + $0xf0] sm:$0xff]
          %v1366 = vld [vmem:[%s1334 + $0xf8] sm:$0xff]
          %1368 = vset.pattern.permute.xlu0 0
          %1369 = vperm.xlu0 %1368, %v1268
          %v1370 = vpop.permute.xlu0 %1369
          %1373 = vset.pattern.permute.xlu0 0
          %1374 = vperm.xlu0 %1373, %v1269
          %v1375 = vpop.permute.xlu0 %1374
          %1378 = vset.pattern.permute.xlu0 0
          %1379 = vperm.xlu0 %1378, %v1270
          %v1380 = vpop.permute.xlu0 %1379
          %1383 = vset.pattern.permute.xlu0 0
          %1384 = vperm.xlu0 %1383, %v1271
          %v1385 = vpop.permute.xlu0 %1384
          %1388 = vset.pattern.permute.xlu0 0
          %1389 = vperm.xlu0 %1388, %v1272
          %v1390 = vpop.permute.xlu0 %1389
          %1393 = vset.pattern.permute.xlu0 0
          %1394 = vperm.xlu0 %1393, %v1273
          %v1395 = vpop.permute.xlu0 %1394
          %1398 = vset.pattern.permute.xlu0 0
          %1399 = vperm.xlu0 %1398, %v1274
          %v1400 = vpop.permute.xlu0 %1399
          %1403 = vset.pattern.permute.xlu0 0
          %1404 = vperm.xlu0 %1403, %v1275
          %v1405 = vpop.permute.xlu0 %1404
          %1408 = vset.pattern.permute.xlu0 0
          %1409 = vperm.xlu0 %1408, %v1276
          %v1410 = vpop.permute.xlu0 %1409
          %1413 = vset.pattern.permute.xlu0 0
          %1414 = vperm.xlu0 %1413, %v1277
          %v1415 = vpop.permute.xlu0 %1414
          %1418 = vset.pattern.permute.xlu0 0
          %1419 = vperm.xlu0 %1418, %v1278
          %v1420 = vpop.permute.xlu0 %1419
          %1423 = vset.pattern.permute.xlu0 0
          %1424 = vperm.xlu0 %1423, %v1279
          %v1425 = vpop.permute.xlu0 %1424
          %1428 = vset.pattern.permute.xlu0 0
          %1429 = vperm.xlu0 %1428, %v1280
          %v1430 = vpop.permute.xlu0 %1429
          %1433 = vset.pattern.permute.xlu0 0
          %1434 = vperm.xlu0 %1433, %v1281
          %v1435 = vpop.permute.xlu0 %1434
          %1438 = vset.pattern.permute.xlu0 0
          %1439 = vperm.xlu0 %1438, %v1282
          %v1440 = vpop.permute.xlu0 %1439
          %1443 = vset.pattern.permute.xlu0 0
          %1444 = vperm.xlu0 %1443, %v1283
          %v1445 = vpop.permute.xlu0 %1444
          %v1447 = vmul.f32 %v1335, %v1370
          %v1448 = vmul.f32 %v1336, %v1370
          %v1449 = vmul.f32 %v1337, %v1375
          %v1450 = vmul.f32 %v1338, %v1375
          %v1451 = vmul.f32 %v1339, %v1380
          %v1452 = vmul.f32 %v1340, %v1380
          %v1453 = vmul.f32 %v1341, %v1385
          %v1454 = vmul.f32 %v1342, %v1385
          %v1455 = vmul.f32 %v1343, %v1390
          %v1456 = vmul.f32 %v1344, %v1390
          %v1457 = vmul.f32 %v1345, %v1395
          %v1458 = vmul.f32 %v1346, %v1395
          %v1459 = vmul.f32 %v1347, %v1400
          %v1460 = vmul.f32 %v1348, %v1400
          %v1461 = vmul.f32 %v1349, %v1405
          %v1462 = vmul.f32 %v1350, %v1405
          %v1463 = vmul.f32 %v1351, %v1410
          %v1464 = vmul.f32 %v1352, %v1410
          %v1465 = vmul.f32 %v1353, %v1415
          %v1466 = vmul.f32 %v1354, %v1415
          %v1467 = vmul.f32 %v1355, %v1420
          %v1468 = vmul.f32 %v1356, %v1420
          %v1469 = vmul.f32 %v1357, %v1425
          %v1470 = vmul.f32 %v1358, %v1425
          %v1471 = vmul.f32 %v1359, %v1430
          %v1472 = vmul.f32 %v1360, %v1430
          %v1473 = vmul.f32 %v1361, %v1435
          %v1474 = vmul.f32 %v1362, %v1435
          %v1475 = vmul.f32 %v1363, %v1440
          %v1476 = vmul.f32 %v1364, %v1440
          %v1477 = vmul.f32 %v1365, %v1445
          %v1478 = vmul.f32 %v1366, %v1445
          %1480 = vset.pattern.permute.xlu0 0
          %1481 = vperm.xlu0 %1480, %v1316
          %v1482 = vpop.permute.xlu0 %1481
          %1485 = vset.pattern.permute.xlu0 0
          %1486 = vperm.xlu0 %1485, %v1317
          %v1487 = vpop.permute.xlu0 %1486
          %1490 = vset.pattern.permute.xlu0 0
          %1491 = vperm.xlu0 %1490, %v1318
          %v1492 = vpop.permute.xlu0 %1491
          %1495 = vset.pattern.permute.xlu0 0
          %1496 = vperm.xlu0 %1495, %v1319
          %v1497 = vpop.permute.xlu0 %1496
          %1500 = vset.pattern.permute.xlu0 0
          %1501 = vperm.xlu0 %1500, %v1320
          %v1502 = vpop.permute.xlu0 %1501
          %1505 = vset.pattern.permute.xlu0 0
          %1506 = vperm.xlu0 %1505, %v1321
          %v1507 = vpop.permute.xlu0 %1506
          %1510 = vset.pattern.permute.xlu0 0
          %1511 = vperm.xlu0 %1510, %v1322
          %v1512 = vpop.permute.xlu0 %1511
          %1515 = vset.pattern.permute.xlu0 0
          %1516 = vperm.xlu0 %1515, %v1323
          %v1517 = vpop.permute.xlu0 %1516
          %1520 = vset.pattern.permute.xlu0 0
          %1521 = vperm.xlu0 %1520, %v1324
          %v1522 = vpop.permute.xlu0 %1521
          %1525 = vset.pattern.permute.xlu0 0
          %1526 = vperm.xlu0 %1525, %v1325
          %v1527 = vpop.permute.xlu0 %1526
          %1530 = vset.pattern.permute.xlu0 0
          %1531 = vperm.xlu0 %1530, %v1326
          %v1532 = vpop.permute.xlu0 %1531
          %1535 = vset.pattern.permute.xlu0 0
          %1536 = vperm.xlu0 %1535, %v1327
          %v1537 = vpop.permute.xlu0 %1536
          %1540 = vset.pattern.permute.xlu0 0
          %1541 = vperm.xlu0 %1540, %v1328
          %v1542 = vpop.permute.xlu0 %1541
          %1545 = vset.pattern.permute.xlu0 0
          %1546 = vperm.xlu0 %1545, %v1329
          %v1547 = vpop.permute.xlu0 %1546
          %1550 = vset.pattern.permute.xlu0 0
          %1551 = vperm.xlu0 %1550, %v1330
          %v1552 = vpop.permute.xlu0 %1551
          %1555 = vset.pattern.permute.xlu0 0
          %1556 = vperm.xlu0 %1555, %v1331
          %v1557 = vpop.permute.xlu0 %1556
          %v1559 = vadd.f32 %v1447, %v1482
          %v1560 = vadd.f32 %v1448, %v1482
          %v1561 = vadd.f32 %v1449, %v1487
          %v1562 = vadd.f32 %v1450, %v1487
          %v1563 = vadd.f32 %v1451, %v1492
          %v1564 = vadd.f32 %v1452, %v1492
          %v1565 = vadd.f32 %v1453, %v1497
          %v1566 = vadd.f32 %v1454, %v1497
          %v1567 = vadd.f32 %v1455, %v1502
          %v1568 = vadd.f32 %v1456, %v1502
          %v1569 = vadd.f32 %v1457, %v1507
          %v1570 = vadd.f32 %v1458, %v1507
          %v1571 = vadd.f32 %v1459, %v1512
          %v1572 = vadd.f32 %v1460, %v1512
          %v1573 = vadd.f32 %v1461, %v1517
          %v1574 = vadd.f32 %v1462, %v1517
          %v1575 = vadd.f32 %v1463, %v1522
          %v1576 = vadd.f32 %v1464, %v1522
          %v1577 = vadd.f32 %v1465, %v1527
          %v1578 = vadd.f32 %v1466, %v1527
          %v1579 = vadd.f32 %v1467, %v1532
          %v1580 = vadd.f32 %v1468, %v1532
          %v1581 = vadd.f32 %v1469, %v1537
          %v1582 = vadd.f32 %v1470, %v1537
          %v1583 = vadd.f32 %v1471, %v1542
          %v1584 = vadd.f32 %v1472, %v1542
          %v1585 = vadd.f32 %v1473, %v1547
          %v1586 = vadd.f32 %v1474, %v1547
          %v1587 = vadd.f32 %v1475, %v1552
          %v1588 = vadd.f32 %v1476, %v1552
          %v1589 = vadd.f32 %v1477, %v1557
          %v1590 = vadd.f32 %v1478, %v1557
          %v1591 = vmul.f32 %v1559, 0.2
          %v1592 = vmul.f32 %v1560, 0.2
          %v1593 = vmul.f32 %v1561, 0.2
          %v1594 = vmul.f32 %v1562, 0.2
          %v1595 = vmul.f32 %v1563, 0.2
          %v1596 = vmul.f32 %v1564, 0.2
          %v1597 = vmul.f32 %v1565, 0.2
          %v1598 = vmul.f32 %v1566, 0.2
          %v1599 = vmul.f32 %v1567, 0.2
          %v1600 = vmul.f32 %v1568, 0.2
          %v1601 = vmul.f32 %v1569, 0.2
          %v1602 = vmul.f32 %v1570, 0.2
          %v1603 = vmul.f32 %v1571, 0.2
          %v1604 = vmul.f32 %v1572, 0.2
          %v1605 = vmul.f32 %v1573, 0.2
          %v1606 = vmul.f32 %v1574, 0.2
          %v1607 = vmul.f32 %v1575, 0.2
          %v1608 = vmul.f32 %v1576, 0.2
          %v1609 = vmul.f32 %v1577, 0.2
          %v1610 = vmul.f32 %v1578, 0.2
          %v1611 = vmul.f32 %v1579, 0.2
          %v1612 = vmul.f32 %v1580, 0.2
          %v1613 = vmul.f32 %v1581, 0.2
          %v1614 = vmul.f32 %v1582, 0.2
          %v1615 = vmul.f32 %v1583, 0.2
          %v1616 = vmul.f32 %v1584, 0.2
          %v1617 = vmul.f32 %v1585, 0.2
          %v1618 = vmul.f32 %v1586, 0.2
          %v1619 = vmul.f32 %v1587, 0.2
          %v1620 = vmul.f32 %v1588, 0.2
          %v1621 = vmul.f32 %v1589, 0.2
          %v1622 = vmul.f32 %v1590, 0.2
          %v1623 = vmax.f32 %v1559, %v1591
          %v1624 = vmax.f32 %v1560, %v1592
          %v1625 = vmax.f32 %v1561, %v1593
          %v1626 = vmax.f32 %v1562, %v1594
          %v1627 = vmax.f32 %v1563, %v1595
          %v1628 = vmax.f32 %v1564, %v1596
          %v1629 = vmax.f32 %v1565, %v1597
          %v1630 = vmax.f32 %v1566, %v1598
          %v1631 = vmax.f32 %v1567, %v1599
          %v1632 = vmax.f32 %v1568, %v1600
          %v1633 = vmax.f32 %v1569, %v1601
          %v1634 = vmax.f32 %v1570, %v1602
          %v1635 = vmax.f32 %v1571, %v1603
          %v1636 = vmax.f32 %v1572, %v1604
          %v1637 = vmax.f32 %v1573, %v1605
          %v1638 = vmax.f32 %v1574, %v1606
          %v1639 = vmax.f32 %v1575, %v1607
          %v1640 = vmax.f32 %v1576, %v1608
          %v1641 = vmax.f32 %v1577, %v1609
          %v1642 = vmax.f32 %v1578, %v1610
          %v1643 = vmax.f32 %v1579, %v1611
          %v1644 = vmax.f32 %v1580, %v1612
          %v1645 = vmax.f32 %v1581, %v1613
          %v1646 = vmax.f32 %v1582, %v1614
          %v1647 = vmax.f32 %v1583, %v1615
          %v1648 = vmax.f32 %v1584, %v1616
          %v1649 = vmax.f32 %v1585, %v1617
          %v1650 = vmax.f32 %v1586, %v1618
          %v1651 = vmax.f32 %v1587, %v1619
          %v1652 = vmax.f32 %v1588, %v1620
          %v1653 = vmax.f32 %v1589, %v1621
          %v1654 = vmax.f32 %v1590, %v1622
          %v1655 = vld [vmem:[%s6] sm:$0x1]
          %1656 = vmatprep.subr.mxu0 %v1624
          %1657 = vmatpush1.msra.mxu0 %v1623
          %1658 = vmatprep.subr.mxu0 %v1626
          %1659 = vmatpush1.msra.mxu0 %v1625
          %1660 = vmatprep.subr.mxu0 %v1628
          %1661 = vmatpush1.msra.mxu0 %v1627
          %1662 = vmatprep.subr.mxu0 %v1630
          %1663 = vmatpush1.msra.mxu0 %v1629
          %1664 = vmatprep.subr.mxu0 %v1632
          %1665 = vmatpush1.msra.mxu0 %v1631
          %1666 = vmatprep.subr.mxu0 %v1634
          %1667 = vmatpush1.msra.mxu0 %v1633
          %1668 = vmatprep.subr.mxu0 %v1636
          %1669 = vmatpush1.msra.mxu0 %v1635
          %1670 = vmatprep.subr.mxu0 %v1638
          %1671 = vmatpush1.msra.mxu0 %v1637
          %1672 = vmatprep.subr.mxu0 %v1640
          %1673 = vmatpush1.msra.mxu0 %v1639
          %1674 = vmatprep.subr.mxu0 %v1642
          %1675 = vmatpush1.msra.mxu0 %v1641
          %1676 = vmatprep.subr.mxu0 %v1644
          %1677 = vmatpush1.msra.mxu0 %v1643
          %1678 = vmatprep.subr.mxu0 %v1646
          %1679 = vmatpush1.msra.mxu0 %v1645
          %1680 = vmatprep.subr.mxu0 %v1648
          %1681 = vmatpush1.msra.mxu0 %v1647
          %1682 = vmatprep.subr.mxu0 %v1650
          %1683 = vmatpush1.msra.mxu0 %v1649
          %1684 = vmatprep.subr.mxu0 %v1652
          %1685 = vmatpush1.msra.mxu0 %v1651
          %1686 = vmatprep.subr.mxu0 %v1654
          %1687 = vmatpush1.msra.mxu0 %v1653
          %1688 = vmatprep.subr.mxu0 0.0
          %1689 = vmatpush1.msra.mxu0 0.0
          %1690 = vmatprep.subr.mxu0 0.0
          %1691 = vmatpush1.msra.mxu0 0.0
          %1692 = vmatprep.subr.mxu0 0.0
          %1693 = vmatpush1.msra.mxu0 0.0
          %1694 = vmatprep.subr.mxu0 0.0
          %1695 = vmatpush1.msra.mxu0 0.0
          %1696 = vmatprep.subr.mxu0 0.0
          %1697 = vmatpush1.msra.mxu0 0.0
          %1698 = vmatprep.subr.mxu0 0.0
          %1699 = vmatpush1.msra.mxu0 0.0
          %1700 = vmatprep.subr.mxu0 0.0
          %1701 = vmatpush1.msra.mxu0 0.0
          %1702 = vmatprep.subr.mxu0 0.0
          %1703 = vmatpush1.msra.mxu0 0.0
          %1704 = vmatprep.subr.mxu0 0.0
          %1705 = vmatpush1.msra.mxu0 0.0
          %1706 = vmatprep.subr.mxu0 0.0
          %1707 = vmatpush1.msra.mxu0 0.0
          %1708 = vmatprep.subr.mxu0 0.0
          %1709 = vmatpush1.msra.mxu0 0.0
          %1710 = vmatprep.subr.mxu0 0.0
          %1711 = vmatpush1.msra.mxu0 0.0
          %1712 = vmatprep.subr.mxu0 0.0
          %1713 = vmatpush1.msra.mxu0 0.0
          %1714 = vmatprep.subr.mxu0 0.0
          %1715 = vmatpush1.msra.mxu0 0.0
          %1716 = vmatprep.subr.mxu0 0.0
          %1717 = vmatpush1.msra.mxu0 0.0
          %1718 = vmatprep.subr.mxu0 0.0
          %1719 = vmatpush1.msra.mxu0 0.0
          %1720 = vmatprep.mubr.f32.mxu0 0.0
          %1721 = vmatmul.mubr.f32.gmra.mrb[0].mxu0 %v1655
          %v1722 = vpop.f32.mrb[0].mxu0
          %v1723 = vadd.f32 0.0, %v1722
          %v1724 = vpop.f32.mrb[0].mxu0
          %v1725 = vadd.f32 0.0, %v1724
          %1726 = vdwg.mxu0
          %v1729 = vcombine.low %v1723, %v1725
          %v1731 = vunpack.c.l.s4 1966171168
          %v1732 = vunpack.c.0.s8 %v1731
          %v1733 = vlaneseq
          %v1734 = vshrl.u32 %v1733, 7
          %v1735 = vsub.s32 %v1732, %v1734
          %v1736 = vrot.slane %v1729, %v1735
          %v1738 = vunpack.c.l.s4 1966171168
          %v1739 = vunpack.c.0.s8 %v1738
          %v1740 = vlaneseq
          %v1741 = vshrl.u32 %v1740, 7
          %v1742 = vsub.s32 %v1739, %v1741
          %v1743 = vrot.slane %v1736, %v1742
          %v1745 = vlaneseq
          %vm1746 = vcmp.ge.s32.totalorder %v1745, 0
          %vm1747 = vcmp.lt.s32.totalorder %v1745, 256
          %vm1748 = vmand %vm1746, %vm1747
          %1749 = vst.msk [vmem:[%s322] sm:$0x3] %vm1748, %v1743
        $region60: #{tpu_custom_call.1} parent=47 // pred_fallthru
          _
        %s1750 = sand.u32 %s214, 1
        %s1751 = scalar_lea.sflag [#allocation6], %s1750
        %s1752 = sand.u32 %s214, 1
        %s1753 = smul.addr %s1752, 2
        %s1754 = scalar_lea.vmem [#allocation5], %s1753
        // Predicated region
        $region61: #{tpu_custom_call.1} parent=47 // pred_check
          %p1755 = pneg %p224
        $region62: #{tpu_custom_call.1} parent=47 // pred_check_branch
          %1757 = sbr.rel (%p1755) target = $region64
        $region63: #{tpu_custom_call.1} parent=47 // pred_region
          %s1758 = smul.u32 %s27, %s26
          %s1759 = smul.u32 %s28, %s26
          %s1760 = smul.u32 2, %s1759
          %s1762 = ssub.s32 32, 32
          %1763 = vsyncadd %s1751, %s1762
          %s1764 = smul.addr %s1758, 2
          %s1765 = sadd.s32 %s1760, %s1764
          %s1766 = smul.addr %s1765, 16
          %s1767 = scalar_lea.hbm %s7, %s1766
          %s1769 = sshll.u32 %s1754, 4
          %s1770 = int_to_ptr.vmem [resolvable:$true] %s1769
          %1772 = dma.vmem_to_hbm [thread:$0]  %s1770, 32, %s1767, %s1751
        $region64: #{tpu_custom_call.1} parent=47 // pred_fallthru
          _
      $region48: #{tpu_custom_call.1} parent=5 // pred_fallthru
        _
      %p1773 = scmp.le.s32.totalorder 2, %s16
      // Predicated region
      $region65: #{tpu_custom_call.1} parent=5 // pred_check
        %p1774 = pneg %p1773
      $region66: #{tpu_custom_call.1} parent=5 // pred_check_branch
        %1776 = sbr.rel (%p1774) target = $region68
      $region67: #{tpu_custom_call.1} parent=5 // pred_region
        %s1777 = ssub.s32 %s16, 2
        // Predicated region
        $region69: #{tpu_custom_call.1} parent=67 // pred_check
          %p1778 = pneg %p230
        $region70: #{tpu_custom_call.1} parent=67 // pred_check_branch
          %1780 = sbr.rel (%p1778) target = $region72
        $region71: #{tpu_custom_call.1} parent=67 // pred_region
          %s1781 = sand.u32 %s215, 1
          %s1782 = scalar_lea.sflag [#allocation6], %s1781
          %s1783 = sand.u32 %s215, 1
          %s1784 = smul.addr %s1783, 2
          %s1785 = scalar_lea.vmem [#allocation5], %s1784
          %1786 = dma.done %s1782, 32
        $region72: #{tpu_custom_call.1} parent=67 // pred_fallthru
          _
      $region68: #{tpu_custom_call.1} parent=5 // pred_fallthru
        _
    $region6: #{tpu_custom_call.1} parent=1 // loop_footer
      %s20 = sadd.s32 1, %s16
    $region7: #{tpu_custom_call.1} parent=1 // loop_footer_branch
      %15 = sbr.rel target = $region3
    $region8: #{tpu_custom_call.1} parent=1 // loop_exit
      _
    %1787 = vsyncpa [#allocation6], 1
    %s1788 = scalar_lea.sflag [#allocation6], 1
    %1789 = vsyncpa %s1788, 1

</llo_original>
